<compile_context>
chip_gen: v6e
topology: v6e:2x2x1
jax: 0.10.0
libtpu: 0.0.40
codegen_flags: <defaults>
</compile_context>

<pallas_src>
import numpy as np
import jax
import jax.numpy as jnp
from jax.experimental import pallas as pl
from jax.experimental.pallas import tpu as pltpu

C_IN = 3          # 'opticalflow_gray' branch of the config
K = 5             # conv kernel size
C_OUT = 16        # conv output channels
HIDDEN = 256      # LSTM hidden size (matches the module)
CKK = C_IN * K * K
CKK_PAD = 128     # contraction dim padded to a lane-tile multiple


# ------------------------- Pallas kernels -------------------------

def conv_pool_kernel(patches_ref, wf_ref, shift_ref, bigpmat_ref, out_ref):
    # patches_ref: (NL*P, 128) im2col patches for ALL frames (zero-padded contraction dim)
    # wf_ref:      (128, 16)   conv weights with BN scale folded in (zero-padded rows)
    # shift_ref:   (1, 16)     conv bias + BN shift, folded (valid post-pool: pool rows sum to 1)
    # bigpmat_ref: (NL*Pp, NL*P) block-diagonal 2x2 average-pool matrix
    conv = jnp.dot(patches_ref[...], wf_ref[...], preferred_element_type=jnp.float32)   # (NL*P, 16)
    pooled = jnp.dot(bigpmat_ref[...], conv, preferred_element_type=jnp.float32)        # (NL*Pp, 16)
    out_ref[...] = jnp.maximum(pooled + shift_ref[...], 0.0)                            # ReLU


def make_lstm_head_kernel(n, l):
    def lstm_head_kernel(feats_ref, wih_ref, b_ref, whh_ref, w1r_ref, b1r_ref, out_ref):
        # feats_ref: (L*N, F) pooled features, time-major rows, layout matched to wih_ref rows
        # wih_ref:   (F, 4H)  input->gate weights (row-permuted on host to match feats layout)
        # whh_ref:   (H, 4H), b_ref: (1, 4H)
        # w1r_ref:   (H, 1), b1r_ref: (1, 1)   fc1 folded into regression head
        # Gate pre-activations for ALL timesteps in one batched matmul (hoisted out of the
        # recurrence).
        gates = (jnp.dot(feats_ref[...], wih_ref[...], preferred_element_type=jnp.float32)
                 + b_ref[...])                                                           # (L*N, 4H)
        h = jnp.zeros((n, HIDDEN), jnp.float32)
        c = jnp.zeros((n, HIDDEN), jnp.float32)
        for t in range(l):                     # small static L: fully unrolled recurrence
            z = gates[t * n:(t + 1) * n, :] + jnp.dot(
                h, whh_ref[...], preferred_element_type=jnp.float32)                    # (N, 4H)
            # PyTorch LSTM gate order: i, f, g, o
            i_g = jax.nn.sigmoid(z[:, 0:HIDDEN])
            f_g = jax.nn.sigmoid(z[:, HIDDEN:2 * HIDDEN])
            g_g = jnp.tanh(z[:, 2 * HIDDEN:3 * HIDDEN])
            o_g = jax.nn.sigmoid(z[:, 3 * HIDDEN:4 * HIDDEN])
            c = f_g * c + i_g * g_g
            h = o_g * jnp.tanh(c)
            # fused fc1+regression: (N, 1).  Output block is VMEM-resident (grid=(1,)),
            # HBM writeback happens once at the end.
            out_ref[t * n:(t + 1) * n, :] = (
                jnp.dot(h, w1r_ref[...], preferred_element_type=jnp.float32) + b1r_ref[...])
    return lstm_head_kernel


# ------------------------- glue (plain JAX / numpy) -------------------------

def im2col(x2, hout, wout):
    # x2: (NL, C, H, W) -> (NL, hout*wout, C*K*K), feature order c*K*K + kh*K + kw
    cols = []
    for kh in range(K):
        for kw in range(K):
            cols.append(x2[:, :, kh:kh + hout, kw:kw + wout])
    stacked = jnp.stack(cols, axis=2)                       # (NL, C, K*K, hout, wout)
    nl = x2.shape[0]
    return stacked.reshape(nl, CKK, hout * wout).transpose(0, 2, 1)


def make_pool_matrix(hout, wout):
    hp, wp = hout // 2, wout // 2
    pmat = np.zeros((hp * wp, hout * wout), dtype=np.float32)
    for ph in range(hp):
        for pw in range(wp):
            for dh in range(2):
                for dw in range(2):
                    pmat[ph * wp + pw, (2 * ph + dh) * wout + (2 * pw + dw)] = 0.25
    return pmat


def bandari_forward(x, params):
    N, L, C, H, W = x.shape
    hout, wout = H - K + 1, W - K + 1
    hp, wp = hout // 2, wout // 2
    NL = N * L
    P = hout * wout
    Pp = hp * wp
    F_dim = C_OUT * Pp

    # Time-major frame order (frame = t*N + n) so the recurrent stage reads contiguous
    # per-timestep rows.  Conv/BN/pool are per-frame, so reordering is exact.
    x_tm = jnp.transpose(x, (1, 0, 2, 3, 4)).reshape(NL, C, H, W)
    patches = im2col(x_tm, hout, wout).reshape(NL * P, CKK)
    patches = jnp.pad(patches, ((0, 0), (0, CKK_PAD - CKK)))          # (NL*P, 128)

    # Fold BatchNorm (eval) + conv bias into a per-channel scale/shift.
    s = params['bn_gamma'] / jnp.sqrt(params['bn_var'] + 1e-5)
    wf_scaled = jnp.pad(params['conv_wf'] * s[None, :], ((0, CKK_PAD - CKK), (0, 0)))  # (128, 16)
    shift = ((params['conv_b'] - params['bn_mean']) * s + params['bn_beta'])[None, :]  # (1, 16)

    # Block-diagonal pooling matrix covering all frames (rows sum to 1.0).
    bigpmat = jnp.asarray(np.kron(np.eye(NL, dtype=np.float32), make_pool_matrix(hout, wout)))

    conv_out = pl.pallas_call(
        conv_pool_kernel,
        out_shape=jax.ShapeDtypeStruct((NL * Pp, C_OUT), jnp.float32),
        grid=(1,),
        in_specs=[
            pl.BlockSpec((NL * P, CKK_PAD), lambda i: (0, 0)),
            pl.BlockSpec((CKK_PAD, C_OUT), lambda i: (0, 0)),
            pl.BlockSpec((1, C_OUT), lambda i: (0, 0)),
            pl.BlockSpec((NL * Pp, NL * P), lambda i: (0, 0)),
        ],
        out_specs=pl.BlockSpec((NL * Pp, C_OUT), lambda i: (0, 0)),
        compiler_params=pltpu.CompilerParams(dimension_semantics=("arbitrary",)),
    )(patches, wf_scaled, shift, bigpmat)                             # (NL*Pp, 16)

    # Free (bitcast) reshape: feature column order is p*C_OUT + c.
    feats = conv_out.reshape(NL, Pp * C_OUT)

    # Permute W_ih rows (PyTorch feature order c*Pp + p) to match feats' p*C_OUT + c order.
    wih_perm = (params['wih'].reshape(C_OUT, Pp, 4 * HIDDEN)
                .transpose(1, 0, 2).reshape(Pp * C_OUT, 4 * HIDDEN))
    # Fold fc1 into the regression head (exact: no nonlinearity between them).
    w1r = params['w1'] @ params['wr']                                  # (HIDDEN, 1)
    b1r = params['b1'] @ params['wr'] + params['br']                   # (1, 1)

    out = pl.pallas_call(
        make_lstm_head_kernel(N, L),
        out_shape=jax.ShapeDtypeStruct((NL, 1), jnp.float32),
        grid=(1,),
        in_specs=[
            pl.BlockSpec((NL, F_dim), lambda i: (0, 0)),
            pl.BlockSpec((F_dim, 4 * HIDDEN), lambda i: (0, 0)),
            pl.BlockSpec((1, 4 * HIDDEN), lambda i: (0, 0)),
            pl.BlockSpec((HIDDEN, 4 * HIDDEN), lambda i: (0, 0)),
            pl.BlockSpec((HIDDEN, 1), lambda i: (0, 0)),
            pl.BlockSpec((1, 1), lambda i: (0, 0)),
        ],
        out_specs=pl.BlockSpec((NL, 1), lambda i: (0, 0)),
        compiler_params=pltpu.CompilerParams(dimension_semantics=("arbitrary",)),
    )(feats, wih_perm, params['b_lstm'], params['whh'], w1r, b1r)      # (L*N, 1) time-major

    return out.reshape(L, N).T                                         # (N, L), matches x7.squeeze()


# ------------------------- deterministic params & reference -------------------------

def init_params(key, f_dim):
    ks = jax.random.split(key, 12)
    u = lambda k, shape, scale: jax.random.uniform(k, shape, jnp.float32, -scale, scale)
    return dict(
        conv_wf=u(ks[0], (CKK, C_OUT), 0.08),                # == torch weight.reshape(16, 75).T
        conv_b=u(ks[1], (C_OUT,), 0.08),
        bn_gamma=jax.random.uniform(ks[2], (C_OUT,), jnp.float32, 0.5, 1.5),
        bn_beta=u(ks[3], (C_OUT,), 0.1),
        bn_mean=u(ks[4], (C_OUT,), 0.1),
        bn_var=jax.random.uniform(ks[5], (C_OUT,), jnp.float32, 0.5, 1.5),
        wih=u(ks[6], (f_dim, 4 * HIDDEN), 1.0 / 16),          # == W_ih.T
        whh=u(ks[7], (HIDDEN, 4 * HIDDEN), 1.0 / 16),         # == W_hh.T
        b_lstm=u(ks[8], (1, 4 * HIDDEN), 1.0 / 16),           # == b_ih + b_hh
        w1=u(ks[9], (HIDDEN, HIDDEN), 1.0 / 16),              # == fc1.weight.T
        b1=u(ks[10], (1, HIDDEN), 1.0 / 16),
        wr=u(ks[11], (HIDDEN, 1), 1.0 / 16),                  # == regression.weight.T
        br=jnp.zeros((1, 1), jnp.float32),
    )


def reference_forward(x, params):
    N, L, C, H, W = x.shape
    x2 = x.reshape(N * L, C, H, W)
    w_oihw = params['conv_wf'].T.reshape(C_OUT, C, K, K)
    conv = jax.lax.conv_general_dilated(x2, w_oihw, (1, 1), 'VALID',
                                        dimension_numbers=('NCHW', 'OIHW', 'NCHW'))
    conv = conv + params['conv_b'][None, :, None, None]
    s = params['bn_gamma'] / jnp.sqrt(params['bn_var'] + 1e-5)
    bn = (conv - params['bn_mean'][None, :, None, None]) * s[None, :, None, None] \
        + params['bn_beta'][None, :, None, None]
    hc, wc = bn.shape[2], bn.shape[3]
    pooled = bn.reshape(N * L, C_OUT, hc // 2, 2, wc // 2, 2).mean(axis=(3, 5))
    act = jnp.maximum(pooled, 0.0)
    feats = act.reshape(N, L, -1)
    h = jnp.zeros((N, HIDDEN), jnp.float32)
    c = jnp.zeros((N, HIDDEN), jnp.float32)
    outs = []
    for t in range(L):
        z = feats[:, t] @ params['wih'] + h @ params['whh'] + params['b_lstm']
        i = jax.nn.sigmoid(z[:, :HIDDEN])
        f = jax.nn.sigmoid(z[:, HIDDEN:2 * HIDDEN])
        g = jnp.tanh(z[:, 2 * HIDDEN:3 * HIDDEN])
        o = jax.nn.sigmoid(z[:, 3 * HIDDEN:])
        c = f * c + i * g
        h = o * jnp.tanh(c)
        y = h @ params['w1'] + params['b1']
        outs.append(y @ params['wr'] + params['br'])
    return jnp.stack(outs, axis=1).squeeze()


if __name__ == "__main__":
    N, L, H, W = 2, 4, 16, 16                       # small shapes: batch=2, seq=4, 16x16 frames
    key = jax.random.PRNGKey(0)
    kx, kp = jax.random.split(key)
    x = jax.random.normal(kx, (N, L, C_IN, H, W), jnp.float32)

    hout, wout = H - K + 1, W - K + 1
    f_dim = C_OUT * (hout // 2) * (wout // 2)       # LSTM input size (130416 at full res)
    params = init_params(kp, f_dim)

    out = bandari_forward(x, params)
    out = jax.block_until_ready(out)

    ref = reference_forward(x, params)
    np.testing.assert_allclose(np.asarray(out), np.asarray(ref), rtol=2e-2, atol=2e-2)
    print("KERNEL_OK")
</pallas_src>

<mosaic_0001>
module attributes {stable_mosaic.version = 11 : i64} {
  func.func @conv_pool_kernel(%arg0: i32, %arg1: memref<1152x128xf32, #tpu.memory_space<vmem>>, %arg2: memref<128x16xf32, #tpu.memory_space<vmem>>, %arg3: memref<1x16xf32, #tpu.memory_space<vmem>>, %arg4: memref<288x1152xf32, #tpu.memory_space<vmem>>, %arg5: memref<288x16xf32, #tpu.memory_space<vmem>>) attributes {dimension_semantics = [#tpu.dimension_semantics<arbitrary>], iteration_bounds = array<i64: 1>, scalar_prefetch = 0 : i64, scratch_operands = 0 : i64, tpu.core_type = #tpu.core_type<tc>, window_params = [{pipeline_mode = #tpu.pipeline_mode<synchronous>, transform_indices = @transform_0, window_bounds = array<i64: 1152, 128>}, {pipeline_mode = #tpu.pipeline_mode<synchronous>, transform_indices = @transform_1, window_bounds = array<i64: 128, 16>}, {pipeline_mode = #tpu.pipeline_mode<synchronous>, transform_indices = @transform_2, window_bounds = array<i64: 1, 16>}, {pipeline_mode = #tpu.pipeline_mode<synchronous>, transform_indices = @transform_3, window_bounds = array<i64: 288, 1152>}, {pipeline_mode = #tpu.pipeline_mode<synchronous>, transform_indices = @transform_4, window_bounds = array<i64: 288, 16>}]} {
    %c0 = arith.constant 0 : index
    %c0_0 = arith.constant 0 : index
    %0 = vector.load %arg1[%c0, %c0_0] : memref<1152x128xf32, #tpu.memory_space<vmem>>, vector<1152x128xf32>
    %c0_1 = arith.constant 0 : index
    %c0_2 = arith.constant 0 : index
    %1 = vector.load %arg2[%c0_1, %c0_2] : memref<128x16xf32, #tpu.memory_space<vmem>>, vector<128x16xf32>
    %cst = arith.constant dense<0.000000e+00> : vector<1152x16xf32>
    %2 = tpu.matmul %0, %1, %cst {dimension_numbers = #tpu.dot_dimension_numbers<[1], [0], [0], [1], [0, 0, 1, 1], [], []>} : vector<1152x128xf32>, vector<128x16xf32>, vector<1152x16xf32> -> vector<1152x16xf32>
    %c0_3 = arith.constant 0 : index
    %c0_4 = arith.constant 0 : index
    %3 = vector.load %arg4[%c0_3, %c0_4] : memref<288x1152xf32, #tpu.memory_space<vmem>>, vector<288x1152xf32>
    %cst_5 = arith.constant dense<0.000000e+00> : vector<288x16xf32>
    %4 = tpu.matmul %3, %2, %cst_5 {dimension_numbers = #tpu.dot_dimension_numbers<[1], [0], [0], [1], [0, 0, 1, 1], [], []>} : vector<288x1152xf32>, vector<1152x16xf32>, vector<288x16xf32> -> vector<288x16xf32>
    %c0_6 = arith.constant 0 : index
    %c0_7 = arith.constant 0 : index
    %5 = vector.load %arg3[%c0_6, %c0_7] : memref<1x16xf32, #tpu.memory_space<vmem>>, vector<1x16xf32>
    %6 = vector.broadcast %5 : vector<1x16xf32> to vector<288x16xf32>
    %7 = arith.addf %4, %6 : vector<288x16xf32>
    %cst_8 = arith.constant 0.000000e+00 : f32
    %8 = vector.broadcast %cst_8 : f32 to vector<288x16xf32>
    %9 = arith.maximumf %7, %8 : vector<288x16xf32>
    %c0_9 = arith.constant 0 : index
    %c0_10 = arith.constant 0 : index
    %10 = vector.load %arg5[%c0_9, %c0_10] : memref<288x16xf32, #tpu.memory_space<vmem>>, vector<288x16xf32>
    tpu.vector_store %arg5[%c0_9, %c0_10], %9 {strides = array<i32>} : memref<288x16xf32, #tpu.memory_space<vmem>>, vector<288x16xf32>,
    return
  }
  func.func @transform_0(%arg0: i32) -> (i32, i32) {
    %c0_i32 = arith.constant 0 : i32
    %c0_i32_0 = arith.constant 0 : i32
    %c0_i32_1 = arith.constant 0 : i32
    return %c0_i32, %c0_i32_0 : i32, i32
  }
  func.func @transform_1(%arg0: i32) -> (i32, i32) {
    %c0_i32 = arith.constant 0 : i32
    %c0_i32_0 = arith.constant 0 : i32
    %c0_i32_1 = arith.constant 0 : i32
    return %c0_i32, %c0_i32_0 : i32, i32
  }
  func.func @transform_2(%arg0: i32) -> (i32, i32) {
    %c0_i32 = arith.constant 0 : i32
    %c0_i32_0 = arith.constant 0 : i32
    %c0_i32_1 = arith.constant 0 : i32
    return %c0_i32, %c0_i32_0 : i32, i32
  }
  func.func @transform_3(%arg0: i32) -> (i32, i32) {
    %c0_i32 = arith.constant 0 : i32
    %c0_i32_0 = arith.constant 0 : i32
    %c0_i32_1 = arith.constant 0 : i32
    return %c0_i32, %c0_i32_0 : i32, i32
  }
  func.func @transform_4(%arg0: i32) -> (i32, i32) {
    %c0_i32 = arith.constant 0 : i32
    %c0_i32_0 = arith.constant 0 : i32
    %c0_i32_1 = arith.constant 0 : i32
    return %c0_i32, %c0_i32_0 : i32, i32
  }
}

</mosaic_0001>

<llo_original>
// kernel: tpu_custom_call.1
$region0: #{tpu_custom_call.1}
  #allocation0 [shape = 'u32[]', space=smem, size = 0x4, offset = 0x4, fixed_abs, tag = 'smem constant byte address 0x4 - core index']
  #allocation1 [shape = 'u32[144,128]{1,0:T(1,128)}', space=vmem, size = 0x12000, scoped, tag = 'internal scratch']
  %s0 = inlined_call_operand.hbm [shape: f32[1152,128], index: 0, kind: input, shape index: {}]
  %s1 = inlined_call_operand.vmem [shape: f32[128,16], index: 1, kind: input, shape index: {}]
  %s2 = inlined_call_operand.hbm [shape: f32[1,16], index: 2, kind: input, shape index: {}]
  %s3 = inlined_call_operand.hbm [shape: f32[288,1152], index: 3, kind: input, shape index: {}]
  %s4 = inlined_call_operand.vmem [shape: f32[288,16], index: 4, kind: output, shape index: {}]
  %s5 = sld [smem:[#allocation0]]
  $region38: #{tpu_custom_call.1} parent=0
    _
  %s7 = ssub.s32 1, %s5
  %s8 = scalar_select 0, %s7, %s5
  $region1: #{tpu_custom_call.1} parent=0
    #allocation2 [shape = 'u8[589824]{0}', space=vmem, size = 0x90000, scoped, tag = 'input window, operand 0, single buffered']
    #allocation3 [shape = 's32[1]{0}', space=sflag, size = 0x4, scoped, tag = 'scoped memory for tpu_custom_call.1']
    #allocation4 [shape = 'u8[512]{0}', space=vmem, size = 0x400, scoped, tag = 'input window, operand 2, single buffered']
    #allocation5 [shape = 's32[1]{0}', space=sflag, size = 0x4, scoped, tag = 'scoped memory for tpu_custom_call.1']
    #allocation6 [shape = 'u8[1327104]{0}', space=vmem, size = 0x144000, scoped, tag = 'input window, operand 3, single buffered']
    %9 = vsyncpa [#allocation3], 0
    %10 = vsyncpa [#allocation5], 0
    // Predicated region
    $region2: #{tpu_custom_call.1} parent=1 // pred_check
      _
    $region3: #{tpu_custom_call.1} parent=1 // pred_check_branch
      %12 = sbr.rel (0) target = $region5
    $region4: #{tpu_custom_call.1} parent=1 // pred_region
      %s14 = ssub.s32 18432, 18432
      %15 = vsyncadd [#allocation3], %s14
      %s16 = sshll.u32 [#allocation2], 4
      %s17 = int_to_ptr.vmem [resolvable:$true] %s16
      %22 = dma.hbm_to_vmem [thread:$0]  %s0, 18432, %s17, [#allocation3], 128, 128, 8
    $region5: #{tpu_custom_call.1} parent=1 // pred_fallthru
      _
    // Predicated region
    $region6: #{tpu_custom_call.1} parent=1 // pred_check
      _
    $region7: #{tpu_custom_call.1} parent=1 // pred_check_branch
      %24 = sbr.rel (0) target = $region9
    $region8: #{tpu_custom_call.1} parent=1 // pred_region
      _
    $region9: #{tpu_custom_call.1} parent=1 // pred_fallthru
      _
    // Predicated region
    $region10: #{tpu_custom_call.1} parent=1 // pred_check
      _
    $region11: #{tpu_custom_call.1} parent=1 // pred_check_branch
      %26 = sbr.rel (0) target = $region13
    $region12: #{tpu_custom_call.1} parent=1 // pred_region
      %s28 = ssub.s32 16, 16
      %29 = vsyncadd [#allocation5], %s28
      %s31 = sshll.u32 [#allocation4], 4
      %s32 = int_to_ptr.vmem [resolvable:$true] %s31
      %34 = dma.hbm_to_vmem [thread:$0]  %s2, 16, %s32, [#allocation5]
    $region13: #{tpu_custom_call.1} parent=1 // pred_fallthru
      _
    // Predicated region
    $region14: #{tpu_custom_call.1} parent=1 // pred_check
      _
    $region15: #{tpu_custom_call.1} parent=1 // pred_check_branch
      %36 = sbr.rel (0) target = $region17
    $region16: #{tpu_custom_call.1} parent=1 // pred_region
      %s38 = ssub.s32 41472, 41472
      %39 = vsyncadd [#allocation5], %s38
      %s40 = sshll.u32 [#allocation6], 4
      %s41 = int_to_ptr.vmem [resolvable:$true] %s40
      %46 = dma.hbm_to_vmem [thread:$0]  %s3, 41472, %s41, [#allocation5], 1152, 1152, 72
    $region17: #{tpu_custom_call.1} parent=1 // pred_fallthru
      _
    // Predicated region
    $region18: #{tpu_custom_call.1} parent=1 // pred_check
      _
    $region19: #{tpu_custom_call.1} parent=1 // pred_check_branch
      %48 = sbr.rel (0) target = $region21
    $region20: #{tpu_custom_call.1} parent=1 // pred_region
      %49 = dma.done [#allocation3], 18432
    $region21: #{tpu_custom_call.1} parent=1 // pred_fallthru
      _
    // Predicated region
    $region22: #{tpu_custom_call.1} parent=1 // pred_check
      _
    $region23: #{tpu_custom_call.1} parent=1 // pred_check_branch
      %51 = sbr.rel (0) target = $region25
    $region24: #{tpu_custom_call.1} parent=1 // pred_region
      %52 = dma.done [#allocation5], 16
    $region25: #{tpu_custom_call.1} parent=1 // pred_fallthru
      _
    // Predicated region
    $region26: #{tpu_custom_call.1} parent=1 // pred_check
      _
    $region27: #{tpu_custom_call.1} parent=1 // pred_check_branch
      %54 = sbr.rel (0) target = $region29
    $region28: #{tpu_custom_call.1} parent=1 // pred_region
      %55 = dma.done [#allocation5], 41472
    $region29: #{tpu_custom_call.1} parent=1 // pred_fallthru
      _
    %v56 = vld [vmem:[#allocation2] sm:$0xff]
    %v57 = vld [vmem:[#allocation2 + $0x8] sm:$0xff]
    %v58 = vld [vmem:[#allocation2 + $0x10] sm:$0xff]
    %v59 = vld [vmem:[#allocation2 + $0x18] sm:$0xff]
    %v60 = vld [vmem:[#allocation2 + $0x20] sm:$0xff]
    %v61 = vld [vmem:[#allocation2 + $0x28] sm:$0xff]
    %v62 = vld [vmem:[#allocation2 + $0x30] sm:$0xff]
    %v63 = vld [vmem:[#allocation2 + $0x38] sm:$0xff]
    %v64 = vld [vmem:[#allocation2 + $0x40] sm:$0xff]
    %v65 = vld [vmem:[#allocation2 + $0x48] sm:$0xff]
    %v66 = vld [vmem:[#allocation2 + $0x50] sm:$0xff]
    %v67 = vld [vmem:[#allocation2 + $0x58] sm:$0xff]
    %v68 = vld [vmem:[#allocation2 + $0x60] sm:$0xff]
    %v69 = vld [vmem:[#allocation2 + $0x68] sm:$0xff]
    %v70 = vld [vmem:[#allocation2 + $0x70] sm:$0xff]
    %v71 = vld [vmem:[#allocation2 + $0x78] sm:$0xff]
    %v72 = vld [vmem:[#allocation2 + $0x80] sm:$0xff]
    %v73 = vld [vmem:[#allocation2 + $0x88] sm:$0xff]
    %v74 = vld [vmem:[#allocation2 + $0x90] sm:$0xff]
    %v75 = vld [vmem:[#allocation2 + $0x98] sm:$0xff]
    %v76 = vld [vmem:[#allocation2 + $0xa0] sm:$0xff]
    %v77 = vld [vmem:[#allocation2 + $0xa8] sm:$0xff]
    %v78 = vld [vmem:[#allocation2 + $0xb0] sm:$0xff]
    %v79 = vld [vmem:[#allocation2 + $0xb8] sm:$0xff]
    %v80 = vld [vmem:[#allocation2 + $0xc0] sm:$0xff]
    %v81 = vld [vmem:[#allocation2 + $0xc8] sm:$0xff]
    %v82 = vld [vmem:[#allocation2 + $0xd0] sm:$0xff]
    %v83 = vld [vmem:[#allocation2 + $0xd8] sm:$0xff]
    %v84 = vld [vmem:[#allocation2 + $0xe0] sm:$0xff]
    %v85 = vld [vmem:[#allocation2 + $0xe8] sm:$0xff]
    %v86 = vld [vmem:[#allocation2 + $0xf0] sm:$0xff]
    %v87 = vld [vmem:[#allocation2 + $0xf8] sm:$0xff]
    %v88 = vld [vmem:[#allocation2 + $0x100] sm:$0xff]
    %v89 = vld [vmem:[#allocation2 + $0x108] sm:$0xff]
    %v90 = vld [vmem:[#allocation2 + $0x110] sm:$0xff]
    %v91 = vld [vmem:[#allocation2 + $0x118] sm:$0xff]
    %v92 = vld [vmem:[#allocation2 + $0x120] sm:$0xff]
    %v93 = vld [vmem:[#allocation2 + $0x128] sm:$0xff]
    %v94 = vld [vmem:[#allocation2 + $0x130] sm:$0xff]
    %v95 = vld [vmem:[#allocation2 + $0x138] sm:$0xff]
    %v96 = vld [vmem:[#allocation2 + $0x140] sm:$0xff]
    %v97 = vld [vmem:[#allocation2 + $0x148] sm:$0xff]
    %v98 = vld [vmem:[#allocation2 + $0x150] sm:$0xff]
    %v99 = vld [vmem:[#allocation2 + $0x158] sm:$0xff]
    %v100 = vld [vmem:[#allocation2 + $0x160] sm:$0xff]
    %v101 = vld [vmem:[#allocation2 + $0x168] sm:$0xff]
    %v102 = vld [vmem:[#allocation2 + $0x170] sm:$0xff]
    %v103 = vld [vmem:[#allocation2 + $0x178] sm:$0xff]
    %v104 = vld [vmem:[#allocation2 + $0x180] sm:$0xff]
    %v105 = vld [vmem:[#allocation2 + $0x188] sm:$0xff]
    %v106 = vld [vmem:[#allocation2 + $0x190] sm:$0xff]
    %v107 = vld [vmem:[#allocation2 + $0x198] sm:$0xff]
    %v108 = vld [vmem:[#allocation2 + $0x1a0] sm:$0xff]
    %v109 = vld [vmem:[#allocation2 + $0x1a8] sm:$0xff]
    %v110 = vld [vmem:[#allocation2 + $0x1b0] sm:$0xff]
    %v111 = vld [vmem:[#allocation2 + $0x1b8] sm:$0xff]
    %v112 = vld [vmem:[#allocation2 + $0x1c0] sm:$0xff]
    %v113 = vld [vmem:[#allocation2 + $0x1c8] sm:$0xff]
    %v114 = vld [vmem:[#allocation2 + $0x1d0] sm:$0xff]
    %v115 = vld [vmem:[#allocation2 + $0x1d8] sm:$0xff]
    %v116 = vld [vmem:[#allocation2 + $0x1e0] sm:$0xff]
    %v117 = vld [vmem:[#allocation2 + $0x1e8] sm:$0xff]
    %v118 = vld [vmem:[#allocation2 + $0x1f0] sm:$0xff]
    %v119 = vld [vmem:[#allocation2 + $0x1f8] sm:$0xff]
    %v120 = vld [vmem:[#allocation2 + $0x200] sm:$0xff]
    %v121 = vld [vmem:[#allocation2 + $0x208] sm:$0xff]
    %v122 = vld [vmem:[#allocation2 + $0x210] sm:$0xff]
    %v123 = vld [vmem:[#allocation2 + $0x218] sm:$0xff]
    %v124 = vld [vmem:[#allocation2 + $0x220] sm:$0xff]
    %v125 = vld [vmem:[#allocation2 + $0x228] sm:$0xff]
    %v126 = vld [vmem:[#allocation2 + $0x230] sm:$0xff]
    %v127 = vld [vmem:[#allocation2 + $0x238] sm:$0xff]
    %v128 = vld [vmem:[#allocation2 + $0x240] sm:$0xff]
    %v129 = vld [vmem:[#allocation2 + $0x248] sm:$0xff]
    %v130 = vld [vmem:[#allocation2 + $0x250] sm:$0xff]
    %v131 = vld [vmem:[#allocation2 + $0x258] sm:$0xff]
    %v132 = vld [vmem:[#allocation2 + $0x260] sm:$0xff]
    %v133 = vld [vmem:[#allocation2 + $0x268] sm:$0xff]
    %v134 = vld [vmem:[#allocation2 + $0x270] sm:$0xff]
    %v135 = vld [vmem:[#allocation2 + $0x278] sm:$0xff]
    %v136 = vld [vmem:[#allocation2 + $0x280] sm:$0xff]
    %v137 = vld [vmem:[#allocation2 + $0x288] sm:$0xff]
    %v138 = vld [vmem:[#allocation2 + $0x290] sm:$0xff]
    %v139 = vld [vmem:[#allocation2 + $0x298] sm:$0xff]
    %v140 = vld [vmem:[#allocation2 + $0x2a0] sm:$0xff]
    %v141 = vld [vmem:[#allocation2 + $0x2a8] sm:$0xff]
    %v142 = vld [vmem:[#allocation2 + $0x2b0] sm:$0xff]
    %v143 = vld [vmem:[#allocation2 + $0x2b8] sm:$0xff]
    %v144 = vld [vmem:[#allocation2 + $0x2c0] sm:$0xff]
    %v145 = vld [vmem:[#allocation2 + $0x2c8] sm:$0xff]
    %v146 = vld [vmem:[#allocation2 + $0x2d0] sm:$0xff]
    %v147 = vld [vmem:[#allocation2 + $0x2d8] sm:$0xff]
    %v148 = vld [vmem:[#allocation2 + $0x2e0] sm:$0xff]
    %v149 = vld [vmem:[#allocation2 + $0x2e8] sm:$0xff]
    %v150 = vld [vmem:[#allocation2 + $0x2f0] sm:$0xff]
    %v151 = vld [vmem:[#allocation2 + $0x2f8] sm:$0xff]
    %v152 = vld [vmem:[#allocation2 + $0x300] sm:$0xff]
    %v153 = vld [vmem:[#allocation2 + $0x308] sm:$0xff]
    %v154 = vld [vmem:[#allocation2 + $0x310] sm:$0xff]
    %v155 = vld [vmem:[#allocation2 + $0x318] sm:$0xff]
    %v156 = vld [vmem:[#allocation2 + $0x320] sm:$0xff]
    %v157 = vld [vmem:[#allocation2 + $0x328] sm:$0xff]
    %v158 = vld [vmem:[#allocation2 + $0x330] sm:$0xff]
    %v159 = vld [vmem:[#allocation2 + $0x338] sm:$0xff]
    %v160 = vld [vmem:[#allocation2 + $0x340] sm:$0xff]
    %v161 = vld [vmem:[#allocation2 + $0x348] sm:$0xff]
    %v162 = vld [vmem:[#allocation2 + $0x350] sm:$0xff]
    %v163 = vld [vmem:[#allocation2 + $0x358] sm:$0xff]
    %v164 = vld [vmem:[#allocation2 + $0x360] sm:$0xff]
    %v165 = vld [vmem:[#allocation2 + $0x368] sm:$0xff]
    %v166 = vld [vmem:[#allocation2 + $0x370] sm:$0xff]
    %v167 = vld [vmem:[#allocation2 + $0x378] sm:$0xff]
    %v168 = vld [vmem:[#allocation2 + $0x380] sm:$0xff]
    %v169 = vld [vmem:[#allocation2 + $0x388] sm:$0xff]
    %v170 = vld [vmem:[#allocation2 + $0x390] sm:$0xff]
    %v171 = vld [vmem:[#allocation2 + $0x398] sm:$0xff]
    %v172 = vld [vmem:[#allocation2 + $0x3a0] sm:$0xff]
    %v173 = vld [vmem:[#allocation2 + $0x3a8] sm:$0xff]
    %v174 = vld [vmem:[#allocation2 + $0x3b0] sm:$0xff]
    %v175 = vld [vmem:[#allocation2 + $0x3b8] sm:$0xff]
    %v176 = vld [vmem:[#allocation2 + $0x3c0] sm:$0xff]
    %v177 = vld [vmem:[#allocation2 + $0x3c8] sm:$0xff]
    %v178 = vld [vmem:[#allocation2 + $0x3d0] sm:$0xff]
    %v179 = vld [vmem:[#allocation2 + $0x3d8] sm:$0xff]
    %v180 = vld [vmem:[#allocation2 + $0x3e0] sm:$0xff]
    %v181 = vld [vmem:[#allocation2 + $0x3e8] sm:$0xff]
    %v182 = vld [vmem:[#allocation2 + $0x3f0] sm:$0xff]
    %v183 = vld [vmem:[#allocation2 + $0x3f8] sm:$0xff]
    %v184 = vld [vmem:[#allocation2 + $0x400] sm:$0xff]
    %v185 = vld [vmem:[#allocation2 + $0x408] sm:$0xff]
    %v186 = vld [vmem:[#allocation2 + $0x410] sm:$0xff]
    %v187 = vld [vmem:[#allocation2 + $0x418] sm:$0xff]
    %v188 = vld [vmem:[#allocation2 + $0x420] sm:$0xff]
    %v189 = vld [vmem:[#allocation2 + $0x428] sm:$0xff]
    %v190 = vld [vmem:[#allocation2 + $0x430] sm:$0xff]
    %v191 = vld [vmem:[#allocation2 + $0x438] sm:$0xff]
    %v192 = vld [vmem:[#allocation2 + $0x440] sm:$0xff]
    %v193 = vld [vmem:[#allocation2 + $0x448] sm:$0xff]
    %v194 = vld [vmem:[#allocation2 + $0x450] sm:$0xff]
    %v195 = vld [vmem:[#allocation2 + $0x458] sm:$0xff]
    %v196 = vld [vmem:[#allocation2 + $0x460] sm:$0xff]
    %v197 = vld [vmem:[#allocation2 + $0x468] sm:$0xff]
    %v198 = vld [vmem:[#allocation2 + $0x470] sm:$0xff]
    %v199 = vld [vmem:[#allocation2 + $0x478] sm:$0xff]
    %v200 = vld [vmem:[%s1] sm:$0xff]
    %v201 = vld [vmem:[%s1 + $0x8] sm:$0xff]
    %v202 = vld [vmem:[%s1 + $0x10] sm:$0xff]
    %v203 = vld [vmem:[%s1 + $0x18] sm:$0xff]
    %v204 = vld [vmem:[%s1 + $0x20] sm:$0xff]
    %v205 = vld [vmem:[%s1 + $0x28] sm:$0xff]
    %v206 = vld [vmem:[%s1 + $0x30] sm:$0xff]
    %v207 = vld [vmem:[%s1 + $0x38] sm:$0xff]
    %v208 = vld [vmem:[%s1 + $0x40] sm:$0xff]
    %v209 = vld [vmem:[%s1 + $0x48] sm:$0xff]
    %v210 = vld [vmem:[%s1 + $0x50] sm:$0xff]
    %v211 = vld [vmem:[%s1 + $0x58] sm:$0xff]
    %v212 = vld [vmem:[%s1 + $0x60] sm:$0xff]
    %v213 = vld [vmem:[%s1 + $0x68] sm:$0xff]
    %v214 = vld [vmem:[%s1 + $0x70] sm:$0xff]
    %v215 = vld [vmem:[%s1 + $0x78] sm:$0xff]
    %216 = vmatprep.subr.mxu0 0.0
    %217 = vmatpush1.msra.mxu0 %v215
    %218 = vmatprep.subr.mxu0 0.0
    %219 = vmatpush1.msra.mxu0 %v214
    %220 = vmatprep.subr.mxu0 0.0
    %221 = vmatpush1.msra.mxu0 %v213
    %222 = vmatprep.subr.mxu0 0.0
    %223 = vmatpush1.msra.mxu0 %v212
    %224 = vmatprep.subr.mxu0 0.0
    %225 = vmatpush1.msra.mxu0 %v211
    %226 = vmatprep.subr.mxu0 0.0
    %227 = vmatpush1.msra.mxu0 %v210
    %228 = vmatprep.subr.mxu0 0.0
    %229 = vmatpush1.msra.mxu0 %v209
    %230 = vmatprep.subr.mxu0 0.0
    %231 = vmatpush1.msra.mxu0 %v208
    %232 = vmatprep.subr.mxu0 0.0
    %233 = vmatpush1.msra.mxu0 %v207
    %234 = vmatprep.subr.mxu0 0.0
    %235 = vmatpush1.msra.mxu0 %v206
    %236 = vmatprep.subr.mxu0 0.0
    %237 = vmatpush1.msra.mxu0 %v205
    %238 = vmatprep.subr.mxu0 0.0
    %239 = vmatpush1.msra.mxu0 %v204
    %240 = vmatprep.subr.mxu0 0.0
    %241 = vmatpush1.msra.mxu0 %v203
    %242 = vmatprep.subr.mxu0 0.0
    %243 = vmatpush1.msra.mxu0 %v202
    %244 = vmatprep.subr.mxu0 0.0
    %245 = vmatpush1.msra.mxu0 %v201
    %246 = vmatprep.subr.mxu0 0.0
    %247 = vmatpush1.msra.mxu0 %v200
    %248 = vmatprep.subr.mxu0 0.0
    %249 = vmatpush2.msra.mxu0 0.0
    %250 = vmatprep.subr.mxu0 0.0
    %251 = vmatpush2.msra.mxu0 0.0
    %252 = vmatprep.subr.mxu0 0.0
    %253 = vmatpush2.msra.mxu0 0.0
    %254 = vmatprep.subr.mxu0 0.0
    %255 = vmatpush2.msra.mxu0 0.0
    %256 = vmatprep.subr.mxu0 0.0
    %257 = vmatpush2.msra.mxu0 0.0
    %258 = vmatprep.subr.mxu0 0.0
    %259 = vmatpush2.msra.mxu0 0.0
    %260 = vmatprep.subr.mxu0 0.0
    %261 = vmatpush2.msra.mxu0 0.0
    %262 = vmatprep.subr.mxu0 0.0
    %263 = vmatpush2.msra.mxu0 0.0
    %264 = vmatprep.subr.mxu0 0.0
    %265 = vmatpush2.msra.mxu0 0.0
    %266 = vmatprep.subr.mxu0 0.0
    %267 = vmatpush2.msra.mxu0 0.0
    %268 = vmatprep.subr.mxu0 0.0
    %269 = vmatpush2.msra.mxu0 0.0
    %270 = vmatprep.subr.mxu0 0.0
    %271 = vmatpush2.msra.mxu0 0.0
    %272 = vmatprep.subr.mxu0 0.0
    %273 = vmatpush2.msra.mxu0 0.0
    %274 = vmatprep.subr.mxu0 0.0
    %275 = vmatpush2.msra.mxu0 0.0
    %276 = vmatprep.subr.mxu0 0.0
    %277 = vmatpush2.msra.mxu0 0.0
    %278 = vmatprep.subr.mxu0 0.0
    %279 = vmatpush2.msra.mxu0 0.0
    %280 = vmatprep.mubr.f32.mxu0 0.0
    %281 = vmatmul.mubr.f32.gmra.mxu0 %v56
    %v282 = vpop.f32.mrf.mxu0
    %v283 = vadd.f32 0.0, %v282
    %v284 = vpop.f32.mrf.mxu0
    %285 = vmatprep.mubr.f32.mxu0 0.0
    %286 = vmatmul.mubr.f32.gmra.mxu0 %v57
    %v287 = vpop.f32.mrf.mxu0
    %v288 = vadd.f32 0.0, %v287
    %v289 = vpop.f32.mrf.mxu0
    %290 = vmatprep.mubr.f32.mxu0 0.0
    %291 = vmatmul.mubr.f32.gmra.mxu0 %v58
    %v292 = vpop.f32.mrf.mxu0
    %v293 = vadd.f32 0.0, %v292
    %v294 = vpop.f32.mrf.mxu0
    %295 = vmatprep.mubr.f32.mxu0 0.0
    %296 = vmatmul.mubr.f32.gmra.mxu0 %v59
    %v297 = vpop.f32.mrf.mxu0
    %v298 = vadd.f32 0.0, %v297
    %v299 = vpop.f32.mrf.mxu0
    %300 = vmatprep.mubr.f32.mxu0 0.0
    %301 = vmatmul.mubr.f32.gmra.mxu0 %v60
    %v302 = vpop.f32.mrf.mxu0
    %v303 = vadd.f32 0.0, %v302
    %v304 = vpop.f32.mrf.mxu0
    %305 = vmatprep.mubr.f32.mxu0 0.0
    %306 = vmatmul.mubr.f32.gmra.mxu0 %v61
    %v307 = vpop.f32.mrf.mxu0
    %v308 = vadd.f32 0.0, %v307
    %v309 = vpop.f32.mrf.mxu0
    %310 = vmatprep.mubr.f32.mxu0 0.0
    %311 = vmatmul.mubr.f32.gmra.mxu0 %v62
    %v312 = vpop.f32.mrf.mxu0
    %v313 = vadd.f32 0.0, %v312
    %v314 = vpop.f32.mrf.mxu0
    %315 = vmatprep.mubr.f32.mxu0 0.0
    %316 = vmatmul.mubr.f32.gmra.mxu0 %v63
    %v317 = vpop.f32.mrf.mxu0
    %v318 = vadd.f32 0.0, %v317
    %v319 = vpop.f32.mrf.mxu0
    %320 = vmatprep.mubr.f32.mxu0 0.0
    %321 = vmatmul.mubr.f32.gmra.mxu0 %v64
    %v322 = vpop.f32.mrf.mxu0
    %v323 = vadd.f32 0.0, %v322
    %v324 = vpop.f32.mrf.mxu0
    %325 = vmatprep.mubr.f32.mxu0 0.0
    %326 = vmatmul.mubr.f32.gmra.mxu0 %v65
    %v327 = vpop.f32.mrf.mxu0
    %v328 = vadd.f32 0.0, %v327
    %v329 = vpop.f32.mrf.mxu0
    %330 = vmatprep.mubr.f32.mxu0 0.0
    %331 = vmatmul.mubr.f32.gmra.mxu0 %v66
    %v332 = vpop.f32.mrf.mxu0
    %v333 = vadd.f32 0.0, %v332
    %v334 = vpop.f32.mrf.mxu0
    %335 = vmatprep.mubr.f32.mxu0 0.0
    %336 = vmatmul.mubr.f32.gmra.mxu0 %v67
    %v337 = vpop.f32.mrf.mxu0
    %v338 = vadd.f32 0.0, %v337
    %v339 = vpop.f32.mrf.mxu0
    %340 = vmatprep.mubr.f32.mxu0 0.0
    %341 = vmatmul.mubr.f32.gmra.mxu0 %v68
    %v342 = vpop.f32.mrf.mxu0
    %v343 = vadd.f32 0.0, %v342
    %v344 = vpop.f32.mrf.mxu0
    %345 = vmatprep.mubr.f32.mxu0 0.0
    %346 = vmatmul.mubr.f32.gmra.mxu0 %v69
    %v347 = vpop.f32.mrf.mxu0
    %v348 = vadd.f32 0.0, %v347
    %v349 = vpop.f32.mrf.mxu0
    %350 = vmatprep.mubr.f32.mxu0 0.0
    %351 = vmatmul.mubr.f32.gmra.mxu0 %v70
    %v352 = vpop.f32.mrf.mxu0
    %v353 = vadd.f32 0.0, %v352
    %v354 = vpop.f32.mrf.mxu0
    %355 = vmatprep.mubr.f32.mxu0 0.0
    %356 = vmatmul.mubr.f32.gmra.mxu0 %v71
    %v357 = vpop.f32.mrf.mxu0
    %v358 = vadd.f32 0.0, %v357
    %v359 = vpop.f32.mrf.mxu0
    %360 = vmatprep.mubr.f32.mxu0 0.0
    %361 = vmatmul.mubr.f32.gmra.mxu0 %v72
    %v362 = vpop.f32.mrf.mxu0
    %v363 = vadd.f32 0.0, %v362
    %v364 = vpop.f32.mrf.mxu0
    %365 = vmatprep.mubr.f32.mxu0 0.0
    %366 = vmatmul.mubr.f32.gmra.mxu0 %v73
    %v367 = vpop.f32.mrf.mxu0
    %v368 = vadd.f32 0.0, %v367
    %v369 = vpop.f32.mrf.mxu0
    %370 = vmatprep.mubr.f32.mxu0 0.0
    %371 = vmatmul.mubr.f32.gmra.mxu0 %v74
    %v372 = vpop.f32.mrf.mxu0
    %v373 = vadd.f32 0.0, %v372
    %v374 = vpop.f32.mrf.mxu0
    %375 = vmatprep.mubr.f32.mxu0 0.0
    %376 = vmatmul.mubr.f32.gmra.mxu0 %v75
    %v377 = vpop.f32.mrf.mxu0
    %v378 = vadd.f32 0.0, %v377
    %v379 = vpop.f32.mrf.mxu0
    %380 = vmatprep.mubr.f32.mxu0 0.0
    %381 = vmatmul.mubr.f32.gmra.mxu0 %v76
    %v382 = vpop.f32.mrf.mxu0
    %v383 = vadd.f32 0.0, %v382
    %v384 = vpop.f32.mrf.mxu0
    %385 = vmatprep.mubr.f32.mxu0 0.0
    %386 = vmatmul.mubr.f32.gmra.mxu0 %v77
    %v387 = vpop.f32.mrf.mxu0
    %v388 = vadd.f32 0.0, %v387
    %v389 = vpop.f32.mrf.mxu0
    %390 = vmatprep.mubr.f32.mxu0 0.0
    %391 = vmatmul.mubr.f32.gmra.mxu0 %v78
    %v392 = vpop.f32.mrf.mxu0
    %v393 = vadd.f32 0.0, %v392
    %v394 = vpop.f32.mrf.mxu0
    %395 = vmatprep.mubr.f32.mxu0 0.0
    %396 = vmatmul.mubr.f32.gmra.mxu0 %v79
    %v397 = vpop.f32.mrf.mxu0
    %v398 = vadd.f32 0.0, %v397
    %v399 = vpop.f32.mrf.mxu0
    %400 = vmatprep.mubr.f32.mxu0 0.0
    %401 = vmatmul.mubr.f32.gmra.mxu0 %v80
    %v402 = vpop.f32.mrf.mxu0
    %v403 = vadd.f32 0.0, %v402
    %v404 = vpop.f32.mrf.mxu0
    %405 = vmatprep.mubr.f32.mxu0 0.0
    %406 = vmatmul.mubr.f32.gmra.mxu0 %v81
    %v407 = vpop.f32.mrf.mxu0
    %v408 = vadd.f32 0.0, %v407
    %v409 = vpop.f32.mrf.mxu0
    %410 = vmatprep.mubr.f32.mxu0 0.0
    %411 = vmatmul.mubr.f32.gmra.mxu0 %v82
    %v412 = vpop.f32.mrf.mxu0
    %v413 = vadd.f32 0.0, %v412
    %v414 = vpop.f32.mrf.mxu0
    %415 = vmatprep.mubr.f32.mxu0 0.0
    %416 = vmatmul.mubr.f32.gmra.mxu0 %v83
    %v417 = vpop.f32.mrf.mxu0
    %v418 = vadd.f32 0.0, %v417
    %v419 = vpop.f32.mrf.mxu0
    %420 = vmatprep.mubr.f32.mxu0 0.0
    %421 = vmatmul.mubr.f32.gmra.mxu0 %v84
    %v422 = vpop.f32.mrf.mxu0
    %v423 = vadd.f32 0.0, %v422
    %v424 = vpop.f32.mrf.mxu0
    %425 = vmatprep.mubr.f32.mxu0 0.0
    %426 = vmatmul.mubr.f32.gmra.mxu0 %v85
    %v427 = vpop.f32.mrf.mxu0
    %v428 = vadd.f32 0.0, %v427
    %v429 = vpop.f32.mrf.mxu0
    %430 = vmatprep.mubr.f32.mxu0 0.0
    %431 = vmatmul.mubr.f32.gmra.mxu0 %v86
    %v432 = vpop.f32.mrf.mxu0
    %v433 = vadd.f32 0.0, %v432
    %v434 = vpop.f32.mrf.mxu0
    %435 = vmatprep.mubr.f32.mxu0 0.0
    %436 = vmatmul.mubr.f32.gmra.mxu0 %v87
    %v437 = vpop.f32.mrf.mxu0
    %v438 = vadd.f32 0.0, %v437
    %v439 = vpop.f32.mrf.mxu0
    %440 = vmatprep.mubr.f32.mxu0 0.0
    %441 = vmatmul.mubr.f32.gmra.mxu0 %v88
    %v442 = vpop.f32.mrf.mxu0
    %v443 = vadd.f32 0.0, %v442
    %v444 = vpop.f32.mrf.mxu0
    %445 = vmatprep.mubr.f32.mxu0 0.0
    %446 = vmatmul.mubr.f32.gmra.mxu0 %v89
    %v447 = vpop.f32.mrf.mxu0
    %v448 = vadd.f32 0.0, %v447
    %v449 = vpop.f32.mrf.mxu0
    %450 = vmatprep.mubr.f32.mxu0 0.0
    %451 = vmatmul.mubr.f32.gmra.mxu0 %v90
    %v452 = vpop.f32.mrf.mxu0
    %v453 = vadd.f32 0.0, %v452
    %v454 = vpop.f32.mrf.mxu0
    %455 = vmatprep.mubr.f32.mxu0 0.0
    %456 = vmatmul.mubr.f32.gmra.mxu0 %v91
    %v457 = vpop.f32.mrf.mxu0
    %v458 = vadd.f32 0.0, %v457
    %v459 = vpop.f32.mrf.mxu0
    %460 = vmatprep.mubr.f32.mxu0 0.0
    %461 = vmatmul.mubr.f32.gmra.mxu0 %v92
    %v462 = vpop.f32.mrf.mxu0
    %v463 = vadd.f32 0.0, %v462
    %v464 = vpop.f32.mrf.mxu0
    %465 = vmatprep.mubr.f32.mxu0 0.0
    %466 = vmatmul.mubr.f32.gmra.mxu0 %v93
    %v467 = vpop.f32.mrf.mxu0
    %v468 = vadd.f32 0.0, %v467
    %v469 = vpop.f32.mrf.mxu0
    %470 = vmatprep.mubr.f32.mxu0 0.0
    %471 = vmatmul.mubr.f32.gmra.mxu0 %v94
    %v472 = vpop.f32.mrf.mxu0
    %v473 = vadd.f32 0.0, %v472
    %v474 = vpop.f32.mrf.mxu0
    %475 = vmatprep.mubr.f32.mxu0 0.0
    %476 = vmatmul.mubr.f32.gmra.mxu0 %v95
    %v477 = vpop.f32.mrf.mxu0
    %v478 = vadd.f32 0.0, %v477
    %v479 = vpop.f32.mrf.mxu0
    %480 = vmatprep.mubr.f32.mxu0 0.0
    %481 = vmatmul.mubr.f32.gmra.mxu0 %v96
    %v482 = vpop.f32.mrf.mxu0
    %v483 = vadd.f32 0.0, %v482
    %v484 = vpop.f32.mrf.mxu0
    %485 = vmatprep.mubr.f32.mxu0 0.0
    %486 = vmatmul.mubr.f32.gmra.mxu0 %v97
    %v487 = vpop.f32.mrf.mxu0
    %v488 = vadd.f32 0.0, %v487
    %v489 = vpop.f32.mrf.mxu0
    %490 = vmatprep.mubr.f32.mxu0 0.0
    %491 = vmatmul.mubr.f32.gmra.mxu0 %v98
    %v492 = vpop.f32.mrf.mxu0
    %v493 = vadd.f32 0.0, %v492
    %v494 = vpop.f32.mrf.mxu0
    %495 = vmatprep.mubr.f32.mxu0 0.0
    %496 = vmatmul.mubr.f32.gmra.mxu0 %v99
    %v497 = vpop.f32.mrf.mxu0
    %v498 = vadd.f32 0.0, %v497
    %v499 = vpop.f32.mrf.mxu0
    %500 = vmatprep.mubr.f32.mxu0 0.0
    %501 = vmatmul.mubr.f32.gmra.mxu0 %v100
    %v502 = vpop.f32.mrf.mxu0
    %v503 = vadd.f32 0.0, %v502
    %v504 = vpop.f32.mrf.mxu0
    %505 = vmatprep.mubr.f32.mxu0 0.0
    %506 = vmatmul.mubr.f32.gmra.mxu0 %v101
    %v507 = vpop.f32.mrf.mxu0
    %v508 = vadd.f32 0.0, %v507
    %v509 = vpop.f32.mrf.mxu0
    %510 = vmatprep.mubr.f32.mxu0 0.0
    %511 = vmatmul.mubr.f32.gmra.mxu0 %v102
    %v512 = vpop.f32.mrf.mxu0
    %v513 = vadd.f32 0.0, %v512
    %v514 = vpop.f32.mrf.mxu0
    %515 = vmatprep.mubr.f32.mxu0 0.0
    %516 = vmatmul.mubr.f32.gmra.mxu0 %v103
    %v517 = vpop.f32.mrf.mxu0
    %v518 = vadd.f32 0.0, %v517
    %v519 = vpop.f32.mrf.mxu0
    %520 = vmatprep.mubr.f32.mxu0 0.0
    %521 = vmatmul.mubr.f32.gmra.mxu0 %v104
    %v522 = vpop.f32.mrf.mxu0
    %v523 = vadd.f32 0.0, %v522
    %v524 = vpop.f32.mrf.mxu0
    %525 = vmatprep.mubr.f32.mxu0 0.0
    %526 = vmatmul.mubr.f32.gmra.mxu0 %v105
    %v527 = vpop.f32.mrf.mxu0
    %v528 = vadd.f32 0.0, %v527
    %v529 = vpop.f32.mrf.mxu0
    %530 = vmatprep.mubr.f32.mxu0 0.0
    %531 = vmatmul.mubr.f32.gmra.mxu0 %v106
    %v532 = vpop.f32.mrf.mxu0
    %v533 = vadd.f32 0.0, %v532
    %v534 = vpop.f32.mrf.mxu0
    %535 = vmatprep.mubr.f32.mxu0 0.0
    %536 = vmatmul.mubr.f32.gmra.mxu0 %v107
    %v537 = vpop.f32.mrf.mxu0
    %v538 = vadd.f32 0.0, %v537
    %v539 = vpop.f32.mrf.mxu0
    %540 = vmatprep.mubr.f32.mxu0 0.0
    %541 = vmatmul.mubr.f32.gmra.mxu0 %v108
    %v542 = vpop.f32.mrf.mxu0
    %v543 = vadd.f32 0.0, %v542
    %v544 = vpop.f32.mrf.mxu0
    %545 = vmatprep.mubr.f32.mxu0 0.0
    %546 = vmatmul.mubr.f32.gmra.mxu0 %v109
    %v547 = vpop.f32.mrf.mxu0
    %v548 = vadd.f32 0.0, %v547
    %v549 = vpop.f32.mrf.mxu0
    %550 = vmatprep.mubr.f32.mxu0 0.0
    %551 = vmatmul.mubr.f32.gmra.mxu0 %v110
    %v552 = vpop.f32.mrf.mxu0
    %v553 = vadd.f32 0.0, %v552
    %v554 = vpop.f32.mrf.mxu0
    %555 = vmatprep.mubr.f32.mxu0 0.0
    %556 = vmatmul.mubr.f32.gmra.mxu0 %v111
    %v557 = vpop.f32.mrf.mxu0
    %v558 = vadd.f32 0.0, %v557
    %v559 = vpop.f32.mrf.mxu0
    %560 = vmatprep.mubr.f32.mxu0 0.0
    %561 = vmatmul.mubr.f32.gmra.mxu0 %v112
    %v562 = vpop.f32.mrf.mxu0
    %v563 = vadd.f32 0.0, %v562
    %v564 = vpop.f32.mrf.mxu0
    %565 = vmatprep.mubr.f32.mxu0 0.0
    %566 = vmatmul.mubr.f32.gmra.mxu0 %v113
    %v567 = vpop.f32.mrf.mxu0
    %v568 = vadd.f32 0.0, %v567
    %v569 = vpop.f32.mrf.mxu0
    %570 = vmatprep.mubr.f32.mxu0 0.0
    %571 = vmatmul.mubr.f32.gmra.mxu0 %v114
    %v572 = vpop.f32.mrf.mxu0
    %v573 = vadd.f32 0.0, %v572
    %v574 = vpop.f32.mrf.mxu0
    %575 = vmatprep.mubr.f32.mxu0 0.0
    %576 = vmatmul.mubr.f32.gmra.mxu0 %v115
    %v577 = vpop.f32.mrf.mxu0
    %v578 = vadd.f32 0.0, %v577
    %v579 = vpop.f32.mrf.mxu0
    %580 = vmatprep.mubr.f32.mxu0 0.0
    %581 = vmatmul.mubr.f32.gmra.mxu0 %v116
    %v582 = vpop.f32.mrf.mxu0
    %v583 = vadd.f32 0.0, %v582
    %v584 = vpop.f32.mrf.mxu0
    %585 = vmatprep.mubr.f32.mxu0 0.0
    %586 = vmatmul.mubr.f32.gmra.mxu0 %v117
    %v587 = vpop.f32.mrf.mxu0
    %v588 = vadd.f32 0.0, %v587
    %v589 = vpop.f32.mrf.mxu0
    %590 = vmatprep.mubr.f32.mxu0 0.0
    %591 = vmatmul.mubr.f32.gmra.mxu0 %v118
    %v592 = vpop.f32.mrf.mxu0
    %v593 = vadd.f32 0.0, %v592
    %v594 = vpop.f32.mrf.mxu0
    %595 = vmatprep.mubr.f32.mxu0 0.0
    %596 = vmatmul.mubr.f32.gmra.mxu0 %v119
    %v597 = vpop.f32.mrf.mxu0
    %v598 = vadd.f32 0.0, %v597
    %v599 = vpop.f32.mrf.mxu0
    %600 = vmatprep.mubr.f32.mxu0 0.0
    %601 = vmatmul.mubr.f32.gmra.mxu0 %v120
    %v602 = vpop.f32.mrf.mxu0
    %v603 = vadd.f32 0.0, %v602
    %v604 = vpop.f32.mrf.mxu0
    %605 = vmatprep.mubr.f32.mxu0 0.0
    %606 = vmatmul.mubr.f32.gmra.mxu0 %v121
    %v607 = vpop.f32.mrf.mxu0
    %v608 = vadd.f32 0.0, %v607
    %v609 = vpop.f32.mrf.mxu0
    %610 = vmatprep.mubr.f32.mxu0 0.0
    %611 = vmatmul.mubr.f32.gmra.mxu0 %v122
    %v612 = vpop.f32.mrf.mxu0
    %v613 = vadd.f32 0.0, %v612
    %v614 = vpop.f32.mrf.mxu0
    %615 = vmatprep.mubr.f32.mxu0 0.0
    %616 = vmatmul.mubr.f32.gmra.mxu0 %v123
    %v617 = vpop.f32.mrf.mxu0
    %v618 = vadd.f32 0.0, %v617
    %v619 = vpop.f32.mrf.mxu0
    %620 = vmatprep.mubr.f32.mxu0 0.0
    %621 = vmatmul.mubr.f32.gmra.mxu0 %v124
    %v622 = vpop.f32.mrf.mxu0
    %v623 = vadd.f32 0.0, %v622
    %v624 = vpop.f32.mrf.mxu0
    %625 = vmatprep.mubr.f32.mxu0 0.0
    %626 = vmatmul.mubr.f32.gmra.mxu0 %v125
    %v627 = vpop.f32.mrf.mxu0
    %v628 = vadd.f32 0.0, %v627
    %v629 = vpop.f32.mrf.mxu0
    %630 = vmatprep.mubr.f32.mxu0 0.0
    %631 = vmatmul.mubr.f32.gmra.mxu0 %v126
    %v632 = vpop.f32.mrf.mxu0
    %v633 = vadd.f32 0.0, %v632
    %v634 = vpop.f32.mrf.mxu0
    %635 = vmatprep.mubr.f32.mxu0 0.0
    %636 = vmatmul.mubr.f32.gmra.mxu0 %v127
    %v637 = vpop.f32.mrf.mxu0
    %v638 = vadd.f32 0.0, %v637
    %v639 = vpop.f32.mrf.mxu0
    %640 = vmatprep.mubr.f32.mxu0 0.0
    %641 = vmatmul.mubr.f32.gmra.mxu0 %v128
    %v642 = vpop.f32.mrf.mxu0
    %v643 = vadd.f32 0.0, %v642
    %v644 = vpop.f32.mrf.mxu0
    %645 = vmatprep.mubr.f32.mxu0 0.0
    %646 = vmatmul.mubr.f32.gmra.mxu0 %v129
    %v647 = vpop.f32.mrf.mxu0
    %v648 = vadd.f32 0.0, %v647
    %v649 = vpop.f32.mrf.mxu0
    %650 = vmatprep.mubr.f32.mxu0 0.0
    %651 = vmatmul.mubr.f32.gmra.mxu0 %v130
    %v652 = vpop.f32.mrf.mxu0
    %v653 = vadd.f32 0.0, %v652
    %v654 = vpop.f32.mrf.mxu0
    %655 = vmatprep.mubr.f32.mxu0 0.0
    %656 = vmatmul.mubr.f32.gmra.mxu0 %v131
    %v657 = vpop.f32.mrf.mxu0
    %v658 = vadd.f32 0.0, %v657
    %v659 = vpop.f32.mrf.mxu0
    %660 = vmatprep.mubr.f32.mxu0 0.0
    %661 = vmatmul.mubr.f32.gmra.mxu0 %v132
    %v662 = vpop.f32.mrf.mxu0
    %v663 = vadd.f32 0.0, %v662
    %v664 = vpop.f32.mrf.mxu0
    %665 = vmatprep.mubr.f32.mxu0 0.0
    %666 = vmatmul.mubr.f32.gmra.mxu0 %v133
    %v667 = vpop.f32.mrf.mxu0
    %v668 = vadd.f32 0.0, %v667
    %v669 = vpop.f32.mrf.mxu0
    %670 = vmatprep.mubr.f32.mxu0 0.0
    %671 = vmatmul.mubr.f32.gmra.mxu0 %v134
    %v672 = vpop.f32.mrf.mxu0
    %v673 = vadd.f32 0.0, %v672
    %v674 = vpop.f32.mrf.mxu0
    %675 = vmatprep.mubr.f32.mxu0 0.0
    %676 = vmatmul.mubr.f32.gmra.mxu0 %v135
    %v677 = vpop.f32.mrf.mxu0
    %v678 = vadd.f32 0.0, %v677
    %v679 = vpop.f32.mrf.mxu0
    %680 = vmatprep.mubr.f32.mxu0 0.0
    %681 = vmatmul.mubr.f32.gmra.mxu0 %v136
    %v682 = vpop.f32.mrf.mxu0
    %v683 = vadd.f32 0.0, %v682
    %v684 = vpop.f32.mrf.mxu0
    %685 = vmatprep.mubr.f32.mxu0 0.0
    %686 = vmatmul.mubr.f32.gmra.mxu0 %v137
    %v687 = vpop.f32.mrf.mxu0
    %v688 = vadd.f32 0.0, %v687
    %v689 = vpop.f32.mrf.mxu0
    %690 = vmatprep.mubr.f32.mxu0 0.0
    %691 = vmatmul.mubr.f32.gmra.mxu0 %v138
    %v692 = vpop.f32.mrf.mxu0
    %v693 = vadd.f32 0.0, %v692
    %v694 = vpop.f32.mrf.mxu0
    %695 = vmatprep.mubr.f32.mxu0 0.0
    %696 = vmatmul.mubr.f32.gmra.mxu0 %v139
    %v697 = vpop.f32.mrf.mxu0
    %v698 = vadd.f32 0.0, %v697
    %v699 = vpop.f32.mrf.mxu0
    %700 = vmatprep.mubr.f32.mxu0 0.0
    %701 = vmatmul.mubr.f32.gmra.mxu0 %v140
    %v702 = vpop.f32.mrf.mxu0
    %v703 = vadd.f32 0.0, %v702
    %v704 = vpop.f32.mrf.mxu0
    %705 = vmatprep.mubr.f32.mxu0 0.0
    %706 = vmatmul.mubr.f32.gmra.mxu0 %v141
    %v707 = vpop.f32.mrf.mxu0
    %v708 = vadd.f32 0.0, %v707
    %v709 = vpop.f32.mrf.mxu0
    %710 = vmatprep.mubr.f32.mxu0 0.0
    %711 = vmatmul.mubr.f32.gmra.mxu0 %v142
    %v712 = vpop.f32.mrf.mxu0
    %v713 = vadd.f32 0.0, %v712
    %v714 = vpop.f32.mrf.mxu0
    %715 = vmatprep.mubr.f32.mxu0 0.0
    %716 = vmatmul.mubr.f32.gmra.mxu0 %v143
    %v717 = vpop.f32.mrf.mxu0
    %v718 = vadd.f32 0.0, %v717
    %v719 = vpop.f32.mrf.mxu0
    %720 = vmatprep.mubr.f32.mxu0 0.0
    %721 = vmatmul.mubr.f32.gmra.mxu0 %v144
    %v722 = vpop.f32.mrf.mxu0
    %v723 = vadd.f32 0.0, %v722
    %v724 = vpop.f32.mrf.mxu0
    %725 = vmatprep.mubr.f32.mxu0 0.0
    %726 = vmatmul.mubr.f32.gmra.mxu0 %v145
    %v727 = vpop.f32.mrf.mxu0
    %v728 = vadd.f32 0.0, %v727
    %v729 = vpop.f32.mrf.mxu0
    %730 = vmatprep.mubr.f32.mxu0 0.0
    %731 = vmatmul.mubr.f32.gmra.mxu0 %v146
    %v732 = vpop.f32.mrf.mxu0
    %v733 = vadd.f32 0.0, %v732
    %v734 = vpop.f32.mrf.mxu0
    %735 = vmatprep.mubr.f32.mxu0 0.0
    %736 = vmatmul.mubr.f32.gmra.mxu0 %v147
    %v737 = vpop.f32.mrf.mxu0
    %v738 = vadd.f32 0.0, %v737
    %v739 = vpop.f32.mrf.mxu0
    %740 = vmatprep.mubr.f32.mxu0 0.0
    %741 = vmatmul.mubr.f32.gmra.mxu0 %v148
    %v742 = vpop.f32.mrf.mxu0
    %v743 = vadd.f32 0.0, %v742
    %v744 = vpop.f32.mrf.mxu0
    %745 = vmatprep.mubr.f32.mxu0 0.0
    %746 = vmatmul.mubr.f32.gmra.mxu0 %v149
    %v747 = vpop.f32.mrf.mxu0
    %v748 = vadd.f32 0.0, %v747
    %v749 = vpop.f32.mrf.mxu0
    %750 = vmatprep.mubr.f32.mxu0 0.0
    %751 = vmatmul.mubr.f32.gmra.mxu0 %v150
    %v752 = vpop.f32.mrf.mxu0
    %v753 = vadd.f32 0.0, %v752
    %v754 = vpop.f32.mrf.mxu0
    %755 = vmatprep.mubr.f32.mxu0 0.0
    %756 = vmatmul.mubr.f32.gmra.mxu0 %v151
    %v757 = vpop.f32.mrf.mxu0
    %v758 = vadd.f32 0.0, %v757
    %v759 = vpop.f32.mrf.mxu0
    %760 = vmatprep.mubr.f32.mxu0 0.0
    %761 = vmatmul.mubr.f32.gmra.mxu0 %v152
    %v762 = vpop.f32.mrf.mxu0
    %v763 = vadd.f32 0.0, %v762
    %v764 = vpop.f32.mrf.mxu0
    %765 = vmatprep.mubr.f32.mxu0 0.0
    %766 = vmatmul.mubr.f32.gmra.mxu0 %v153
    %v767 = vpop.f32.mrf.mxu0
    %v768 = vadd.f32 0.0, %v767
    %v769 = vpop.f32.mrf.mxu0
    %770 = vmatprep.mubr.f32.mxu0 0.0
    %771 = vmatmul.mubr.f32.gmra.mxu0 %v154
    %v772 = vpop.f32.mrf.mxu0
    %v773 = vadd.f32 0.0, %v772
    %v774 = vpop.f32.mrf.mxu0
    %775 = vmatprep.mubr.f32.mxu0 0.0
    %776 = vmatmul.mubr.f32.gmra.mxu0 %v155
    %v777 = vpop.f32.mrf.mxu0
    %v778 = vadd.f32 0.0, %v777
    %v779 = vpop.f32.mrf.mxu0
    %780 = vmatprep.mubr.f32.mxu0 0.0
    %781 = vmatmul.mubr.f32.gmra.mxu0 %v156
    %v782 = vpop.f32.mrf.mxu0
    %v783 = vadd.f32 0.0, %v782
    %v784 = vpop.f32.mrf.mxu0
    %785 = vmatprep.mubr.f32.mxu0 0.0
    %786 = vmatmul.mubr.f32.gmra.mxu0 %v157
    %v787 = vpop.f32.mrf.mxu0
    %v788 = vadd.f32 0.0, %v787
    %v789 = vpop.f32.mrf.mxu0
    %790 = vmatprep.mubr.f32.mxu0 0.0
    %791 = vmatmul.mubr.f32.gmra.mxu0 %v158
    %v792 = vpop.f32.mrf.mxu0
    %v793 = vadd.f32 0.0, %v792
    %v794 = vpop.f32.mrf.mxu0
    %795 = vmatprep.mubr.f32.mxu0 0.0
    %796 = vmatmul.mubr.f32.gmra.mxu0 %v159
    %v797 = vpop.f32.mrf.mxu0
    %v798 = vadd.f32 0.0, %v797
    %v799 = vpop.f32.mrf.mxu0
    %800 = vmatprep.mubr.f32.mxu0 0.0
    %801 = vmatmul.mubr.f32.gmra.mxu0 %v160
    %v802 = vpop.f32.mrf.mxu0
    %v803 = vadd.f32 0.0, %v802
    %v804 = vpop.f32.mrf.mxu0
    %805 = vmatprep.mubr.f32.mxu0 0.0
    %806 = vmatmul.mubr.f32.gmra.mxu0 %v161
    %v807 = vpop.f32.mrf.mxu0
    %v808 = vadd.f32 0.0, %v807
    %v809 = vpop.f32.mrf.mxu0
    %810 = vmatprep.mubr.f32.mxu0 0.0
    %811 = vmatmul.mubr.f32.gmra.mxu0 %v162
    %v812 = vpop.f32.mrf.mxu0
    %v813 = vadd.f32 0.0, %v812
    %v814 = vpop.f32.mrf.mxu0
    %815 = vmatprep.mubr.f32.mxu0 0.0
    %816 = vmatmul.mubr.f32.gmra.mxu0 %v163
    %v817 = vpop.f32.mrf.mxu0
    %v818 = vadd.f32 0.0, %v817
    %v819 = vpop.f32.mrf.mxu0
    %820 = vmatprep.mubr.f32.mxu0 0.0
    %821 = vmatmul.mubr.f32.gmra.mxu0 %v164
    %v822 = vpop.f32.mrf.mxu0
    %v823 = vadd.f32 0.0, %v822
    %v824 = vpop.f32.mrf.mxu0
    %825 = vmatprep.mubr.f32.mxu0 0.0
    %826 = vmatmul.mubr.f32.gmra.mxu0 %v165
    %v827 = vpop.f32.mrf.mxu0
    %v828 = vadd.f32 0.0, %v827
    %v829 = vpop.f32.mrf.mxu0
    %830 = vmatprep.mubr.f32.mxu0 0.0
    %831 = vmatmul.mubr.f32.gmra.mxu0 %v166
    %v832 = vpop.f32.mrf.mxu0
    %v833 = vadd.f32 0.0, %v832
    %v834 = vpop.f32.mrf.mxu0
    %835 = vmatprep.mubr.f32.mxu0 0.0
    %836 = vmatmul.mubr.f32.gmra.mxu0 %v167
    %v837 = vpop.f32.mrf.mxu0
    %v838 = vadd.f32 0.0, %v837
    %v839 = vpop.f32.mrf.mxu0
    %840 = vmatprep.mubr.f32.mxu0 0.0
    %841 = vmatmul.mubr.f32.gmra.mxu0 %v168
    %v842 = vpop.f32.mrf.mxu0
    %v843 = vadd.f32 0.0, %v842
    %v844 = vpop.f32.mrf.mxu0
    %845 = vmatprep.mubr.f32.mxu0 0.0
    %846 = vmatmul.mubr.f32.gmra.mxu0 %v169
    %v847 = vpop.f32.mrf.mxu0
    %v848 = vadd.f32 0.0, %v847
    %v849 = vpop.f32.mrf.mxu0
    %850 = vmatprep.mubr.f32.mxu0 0.0
    %851 = vmatmul.mubr.f32.gmra.mxu0 %v170
    %v852 = vpop.f32.mrf.mxu0
    %v853 = vadd.f32 0.0, %v852
    %v854 = vpop.f32.mrf.mxu0
    %855 = vmatprep.mubr.f32.mxu0 0.0
    %856 = vmatmul.mubr.f32.gmra.mxu0 %v171
    %v857 = vpop.f32.mrf.mxu0
    %v858 = vadd.f32 0.0, %v857
    %v859 = vpop.f32.mrf.mxu0
    %860 = vmatprep.mubr.f32.mxu0 0.0
    %861 = vmatmul.mubr.f32.gmra.mxu0 %v172
    %v862 = vpop.f32.mrf.mxu0
    %v863 = vadd.f32 0.0, %v862
    %v864 = vpop.f32.mrf.mxu0
    %865 = vmatprep.mubr.f32.mxu0 0.0
    %866 = vmatmul.mubr.f32.gmra.mxu0 %v173
    %v867 = vpop.f32.mrf.mxu0
    %v868 = vadd.f32 0.0, %v867
    %v869 = vpop.f32.mrf.mxu0
    %870 = vmatprep.mubr.f32.mxu0 0.0
    %871 = vmatmul.mubr.f32.gmra.mxu0 %v174
    %v872 = vpop.f32.mrf.mxu0
    %v873 = vadd.f32 0.0, %v872
    %v874 = vpop.f32.mrf.mxu0
    %875 = vmatprep.mubr.f32.mxu0 0.0
    %876 = vmatmul.mubr.f32.gmra.mxu0 %v175
    %v877 = vpop.f32.mrf.mxu0
    %v878 = vadd.f32 0.0, %v877
    %v879 = vpop.f32.mrf.mxu0
    %880 = vmatprep.mubr.f32.mxu0 0.0
    %881 = vmatmul.mubr.f32.gmra.mxu0 %v176
    %v882 = vpop.f32.mrf.mxu0
    %v883 = vadd.f32 0.0, %v882
    %v884 = vpop.f32.mrf.mxu0
    %885 = vmatprep.mubr.f32.mxu0 0.0
    %886 = vmatmul.mubr.f32.gmra.mxu0 %v177
    %v887 = vpop.f32.mrf.mxu0
    %v888 = vadd.f32 0.0, %v887
    %v889 = vpop.f32.mrf.mxu0
    %890 = vmatprep.mubr.f32.mxu0 0.0
    %891 = vmatmul.mubr.f32.gmra.mxu0 %v178
    %v892 = vpop.f32.mrf.mxu0
    %v893 = vadd.f32 0.0, %v892
    %v894 = vpop.f32.mrf.mxu0
    %895 = vmatprep.mubr.f32.mxu0 0.0
    %896 = vmatmul.mubr.f32.gmra.mxu0 %v179
    %v897 = vpop.f32.mrf.mxu0
    %v898 = vadd.f32 0.0, %v897
    %v899 = vpop.f32.mrf.mxu0
    %900 = vmatprep.mubr.f32.mxu0 0.0
    %901 = vmatmul.mubr.f32.gmra.mxu0 %v180
    %v902 = vpop.f32.mrf.mxu0
    %v903 = vadd.f32 0.0, %v902
    %v904 = vpop.f32.mrf.mxu0
    %905 = vmatprep.mubr.f32.mxu0 0.0
    %906 = vmatmul.mubr.f32.gmra.mxu0 %v181
    %v907 = vpop.f32.mrf.mxu0
    %v908 = vadd.f32 0.0, %v907
    %v909 = vpop.f32.mrf.mxu0
    %910 = vmatprep.mubr.f32.mxu0 0.0
    %911 = vmatmul.mubr.f32.gmra.mxu0 %v182
    %v912 = vpop.f32.mrf.mxu0
    %v913 = vadd.f32 0.0, %v912
    %v914 = vpop.f32.mrf.mxu0
    %915 = vmatprep.mubr.f32.mxu0 0.0
    %916 = vmatmul.mubr.f32.gmra.mxu0 %v183
    %v917 = vpop.f32.mrf.mxu0
    %v918 = vadd.f32 0.0, %v917
    %v919 = vpop.f32.mrf.mxu0
    %920 = vmatprep.mubr.f32.mxu0 0.0
    %921 = vmatmul.mubr.f32.gmra.mxu0 %v184
    %v922 = vpop.f32.mrf.mxu0
    %v923 = vadd.f32 0.0, %v922
    %v924 = vpop.f32.mrf.mxu0
    %925 = vmatprep.mubr.f32.mxu0 0.0
    %926 = vmatmul.mubr.f32.gmra.mxu0 %v185
    %v927 = vpop.f32.mrf.mxu0
    %v928 = vadd.f32 0.0, %v927
    %v929 = vpop.f32.mrf.mxu0
    %930 = vmatprep.mubr.f32.mxu0 0.0
    %931 = vmatmul.mubr.f32.gmra.mxu0 %v186
    %v932 = vpop.f32.mrf.mxu0
    %v933 = vadd.f32 0.0, %v932
    %v934 = vpop.f32.mrf.mxu0
    %935 = vmatprep.mubr.f32.mxu0 0.0
    %936 = vmatmul.mubr.f32.gmra.mxu0 %v187
    %v937 = vpop.f32.mrf.mxu0
    %v938 = vadd.f32 0.0, %v937
    %v939 = vpop.f32.mrf.mxu0
    %940 = vmatprep.mubr.f32.mxu0 0.0
    %941 = vmatmul.mubr.f32.gmra.mxu0 %v188
    %v942 = vpop.f32.mrf.mxu0
    %v943 = vadd.f32 0.0, %v942
    %v944 = vpop.f32.mrf.mxu0
    %945 = vmatprep.mubr.f32.mxu0 0.0
    %946 = vmatmul.mubr.f32.gmra.mxu0 %v189
    %v947 = vpop.f32.mrf.mxu0
    %v948 = vadd.f32 0.0, %v947
    %v949 = vpop.f32.mrf.mxu0
    %950 = vmatprep.mubr.f32.mxu0 0.0
    %951 = vmatmul.mubr.f32.gmra.mxu0 %v190
    %v952 = vpop.f32.mrf.mxu0
    %v953 = vadd.f32 0.0, %v952
    %v954 = vpop.f32.mrf.mxu0
    %955 = vmatprep.mubr.f32.mxu0 0.0
    %956 = vmatmul.mubr.f32.gmra.mxu0 %v191
    %v957 = vpop.f32.mrf.mxu0
    %v958 = vadd.f32 0.0, %v957
    %v959 = vpop.f32.mrf.mxu0
    %960 = vmatprep.mubr.f32.mxu0 0.0
    %961 = vmatmul.mubr.f32.gmra.mxu0 %v192
    %v962 = vpop.f32.mrf.mxu0
    %v963 = vadd.f32 0.0, %v962
    %v964 = vpop.f32.mrf.mxu0
    %965 = vmatprep.mubr.f32.mxu0 0.0
    %966 = vmatmul.mubr.f32.gmra.mxu0 %v193
    %v967 = vpop.f32.mrf.mxu0
    %v968 = vadd.f32 0.0, %v967
    %v969 = vpop.f32.mrf.mxu0
    %970 = vmatprep.mubr.f32.mxu0 0.0
    %971 = vmatmul.mubr.f32.gmra.mxu0 %v194
    %v972 = vpop.f32.mrf.mxu0
    %v973 = vadd.f32 0.0, %v972
    %v974 = vpop.f32.mrf.mxu0
    %975 = vmatprep.mubr.f32.mxu0 0.0
    %976 = vmatmul.mubr.f32.gmra.mxu0 %v195
    %v977 = vpop.f32.mrf.mxu0
    %v978 = vadd.f32 0.0, %v977
    %v979 = vpop.f32.mrf.mxu0
    %980 = vmatprep.mubr.f32.mxu0 0.0
    %981 = vmatmul.mubr.f32.gmra.mxu0 %v196
    %v982 = vpop.f32.mrf.mxu0
    %v983 = vadd.f32 0.0, %v982
    %v984 = vpop.f32.mrf.mxu0
    %985 = vmatprep.mubr.f32.mxu0 0.0
    %986 = vmatmul.mubr.f32.gmra.mxu0 %v197
    %v987 = vpop.f32.mrf.mxu0
    %v988 = vadd.f32 0.0, %v987
    %v989 = vpop.f32.mrf.mxu0
    %990 = vmatprep.mubr.f32.mxu0 0.0
    %991 = vmatmul.mubr.f32.gmra.mxu0 %v198
    %v992 = vpop.f32.mrf.mxu0
    %v993 = vadd.f32 0.0, %v992
    %v994 = vpop.f32.mrf.mxu0
    %995 = vmatprep.mubr.f32.mxu0 0.0
    %996 = vmatmul.mubr.f32.gmra.mxu0 %v199
    %v997 = vpop.f32.mrf.mxu0
    %v998 = vadd.f32 0.0, %v997
    %v999 = vpop.f32.mrf.mxu0
    %1000 = vdwg.mxu0
    %v1001 = vld [vmem:[#allocation6] sm:$0xff]
    %v1002 = vld [vmem:[#allocation6 + $0x8] sm:$0xff]
    %v1003 = vld [vmem:[#allocation6 + $0x10] sm:$0xff]
    %v1004 = vld [vmem:[#allocation6 + $0x18] sm:$0xff]
    %v1005 = vld [vmem:[#allocation6 + $0x20] sm:$0xff]
    %v1006 = vld [vmem:[#allocation6 + $0x28] sm:$0xff]
    %v1007 = vld [vmem:[#allocation6 + $0x30] sm:$0xff]
    %v1008 = vld [vmem:[#allocation6 + $0x38] sm:$0xff]
    %v1009 = vld [vmem:[#allocation6 + $0x40] sm:$0xff]
    %v1010 = vld [vmem:[#allocation6 + $0x48] sm:$0xff]
    %v1011 = vld [vmem:[#allocation6 + $0x50] sm:$0xff]
    %v1012 = vld [vmem:[#allocation6 + $0x58] sm:$0xff]
    %v1013 = vld [vmem:[#allocation6 + $0x60] sm:$0xff]
    %v1014 = vld [vmem:[#allocation6 + $0x68] sm:$0xff]
    %v1015 = vld [vmem:[#allocation6 + $0x70] sm:$0xff]
    %v1016 = vld [vmem:[#allocation6 + $0x78] sm:$0xff]
    %v1017 = vld [vmem:[#allocation6 + $0x80] sm:$0xff]
    %v1018 = vld [vmem:[#allocation6 + $0x88] sm:$0xff]
    %v1019 = vld [vmem:[#allocation6 + $0x90] sm:$0xff]
    %v1020 = vld [vmem:[#allocation6 + $0x98] sm:$0xff]
    %v1021 = vld [vmem:[#allocation6 + $0xa0] sm:$0xff]
    %v1022 = vld [vmem:[#allocation6 + $0xa8] sm:$0xff]
    %v1023 = vld [vmem:[#allocation6 + $0xb0] sm:$0xff]
    %v1024 = vld [vmem:[#allocation6 + $0xb8] sm:$0xff]
    %v1025 = vld [vmem:[#allocation6 + $0xc0] sm:$0xff]
    %v1026 = vld [vmem:[#allocation6 + $0xc8] sm:$0xff]
    %v1027 = vld [vmem:[#allocation6 + $0xd0] sm:$0xff]
    %v1028 = vld [vmem:[#allocation6 + $0xd8] sm:$0xff]
    %v1029 = vld [vmem:[#allocation6 + $0xe0] sm:$0xff]
    %v1030 = vld [vmem:[#allocation6 + $0xe8] sm:$0xff]
    %v1031 = vld [vmem:[#allocation6 + $0xf0] sm:$0xff]
    %v1032 = vld [vmem:[#allocation6 + $0xf8] sm:$0xff]
    %v1033 = vld [vmem:[#allocation6 + $0x100] sm:$0xff]
    %v1034 = vld [vmem:[#allocation6 + $0x108] sm:$0xff]
    %v1035 = vld [vmem:[#allocation6 + $0x110] sm:$0xff]
    %v1036 = vld [vmem:[#allocation6 + $0x118] sm:$0xff]
    %v1037 = vld [vmem:[#allocation6 + $0x120] sm:$0xff]
    %v1038 = vld [vmem:[#allocation6 + $0x128] sm:$0xff]
    %v1039 = vld [vmem:[#allocation6 + $0x130] sm:$0xff]
    %v1040 = vld [vmem:[#allocation6 + $0x138] sm:$0xff]
    %v1041 = vld [vmem:[#allocation6 + $0x140] sm:$0xff]
    %v1042 = vld [vmem:[#allocation6 + $0x148] sm:$0xff]
    %v1043 = vld [vmem:[#allocation6 + $0x150] sm:$0xff]
    %v1044 = vld [vmem:[#allocation6 + $0x158] sm:$0xff]
    %v1045 = vld [vmem:[#allocation6 + $0x160] sm:$0xff]
    %v1046 = vld [vmem:[#allocation6 + $0x168] sm:$0xff]
    %v1047 = vld [vmem:[#allocation6 + $0x170] sm:$0xff]
    %v1048 = vld [vmem:[#allocation6 + $0x178] sm:$0xff]
    %v1049 = vld [vmem:[#allocation6 + $0x180] sm:$0xff]
    %v1050 = vld [vmem:[#allocation6 + $0x188] sm:$0xff]
    %v1051 = vld [vmem:[#allocation6 + $0x190] sm:$0xff]
    %v1052 = vld [vmem:[#allocation6 + $0x198] sm:$0xff]
    %v1053 = vld [vmem:[#allocation6 + $0x1a0] sm:$0xff]
    %v1054 = vld [vmem:[#allocation6 + $0x1a8] sm:$0xff]
    %v1055 = vld [vmem:[#allocation6 + $0x1b0] sm:$0xff]
    %v1056 = vld [vmem:[#allocation6 + $0x1b8] sm:$0xff]
    %v1057 = vld [vmem:[#allocation6 + $0x1c0] sm:$0xff]
    %v1058 = vld [vmem:[#allocation6 + $0x1c8] sm:$0xff]
    %v1059 = vld [vmem:[#allocation6 + $0x1d0] sm:$0xff]
    %v1060 = vld [vmem:[#allocation6 + $0x1d8] sm:$0xff]
    %v1061 = vld [vmem:[#allocation6 + $0x1e0] sm:$0xff]
    %v1062 = vld [vmem:[#allocation6 + $0x1e8] sm:$0xff]
    %v1063 = vld [vmem:[#allocation6 + $0x1f0] sm:$0xff]
    %v1064 = vld [vmem:[#allocation6 + $0x1f8] sm:$0xff]
    %v1065 = vld [vmem:[#allocation6 + $0x200] sm:$0xff]
    %v1066 = vld [vmem:[#allocation6 + $0x208] sm:$0xff]
    %v1067 = vld [vmem:[#allocation6 + $0x210] sm:$0xff]
    %v1068 = vld [vmem:[#allocation6 + $0x218] sm:$0xff]
    %v1069 = vld [vmem:[#allocation6 + $0x220] sm:$0xff]
    %v1070 = vld [vmem:[#allocation6 + $0x228] sm:$0xff]
    %v1071 = vld [vmem:[#allocation6 + $0x230] sm:$0xff]
    %v1072 = vld [vmem:[#allocation6 + $0x238] sm:$0xff]
    %v1073 = vld [vmem:[#allocation6 + $0x240] sm:$0xff]
    %v1074 = vld [vmem:[#allocation6 + $0x248] sm:$0xff]
    %v1075 = vld [vmem:[#allocation6 + $0x250] sm:$0xff]
    %v1076 = vld [vmem:[#allocation6 + $0x258] sm:$0xff]
    %v1077 = vld [vmem:[#allocation6 + $0x260] sm:$0xff]
    %v1078 = vld [vmem:[#allocation6 + $0x268] sm:$0xff]
    %v1079 = vld [vmem:[#allocation6 + $0x270] sm:$0xff]
    %v1080 = vld [vmem:[#allocation6 + $0x278] sm:$0xff]
    %v1081 = vld [vmem:[#allocation6 + $0x280] sm:$0xff]
    %v1082 = vld [vmem:[#allocation6 + $0x288] sm:$0xff]
    %v1083 = vld [vmem:[#allocation6 + $0x290] sm:$0xff]
    %v1084 = vld [vmem:[#allocation6 + $0x298] sm:$0xff]
    %v1085 = vld [vmem:[#allocation6 + $0x2a0] sm:$0xff]
    %v1086 = vld [vmem:[#allocation6 + $0x2a8] sm:$0xff]
    %v1087 = vld [vmem:[#allocation6 + $0x2b0] sm:$0xff]
    %v1088 = vld [vmem:[#allocation6 + $0x2b8] sm:$0xff]
    %v1089 = vld [vmem:[#allocation6 + $0x2c0] sm:$0xff]
    %v1090 = vld [vmem:[#allocation6 + $0x2c8] sm:$0xff]
    %v1091 = vld [vmem:[#allocation6 + $0x2d0] sm:$0xff]
    %v1092 = vld [vmem:[#allocation6 + $0x2d8] sm:$0xff]
    %v1093 = vld [vmem:[#allocation6 + $0x2e0] sm:$0xff]
    %v1094 = vld [vmem:[#allocation6 + $0x2e8] sm:$0xff]
    %v1095 = vld [vmem:[#allocation6 + $0x2f0] sm:$0xff]
    %v1096 = vld [vmem:[#allocation6 + $0x2f8] sm:$0xff]
    %v1097 = vld [vmem:[#allocation6 + $0x300] sm:$0xff]
    %v1098 = vld [vmem:[#allocation6 + $0x308] sm:$0xff]
    %v1099 = vld [vmem:[#allocation6 + $0x310] sm:$0xff]
    %v1100 = vld [vmem:[#allocation6 + $0x318] sm:$0xff]
    %v1101 = vld [vmem:[#allocation6 + $0x320] sm:$0xff]
    %v1102 = vld [vmem:[#allocation6 + $0x328] sm:$0xff]
    %v1103 = vld [vmem:[#allocation6 + $0x330] sm:$0xff]
    %v1104 = vld [vmem:[#allocation6 + $0x338] sm:$0xff]
    %v1105 = vld [vmem:[#allocation6 + $0x340] sm:$0xff]
    %v1106 = vld [vmem:[#allocation6 + $0x348] sm:$0xff]
    %v1107 = vld [vmem:[#allocation6 + $0x350] sm:$0xff]
    %v1108 = vld [vmem:[#allocation6 + $0x358] sm:$0xff]
    %v1109 = vld [vmem:[#allocation6 + $0x360] sm:$0xff]
    %v1110 = vld [vmem:[#allocation6 + $0x368] sm:$0xff]
    %v1111 = vld [vmem:[#allocation6 + $0x370] sm:$0xff]
    %v1112 = vld [vmem:[#allocation6 + $0x378] sm:$0xff]
    %v1113 = vld [vmem:[#allocation6 + $0x380] sm:$0xff]
    %v1114 = vld [vmem:[#allocation6 + $0x388] sm:$0xff]
    %v1115 = vld [vmem:[#allocation6 + $0x390] sm:$0xff]
    %v1116 = vld [vmem:[#allocation6 + $0x398] sm:$0xff]
    %v1117 = vld [vmem:[#allocation6 + $0x3a0] sm:$0xff]
    %v1118 = vld [vmem:[#allocation6 + $0x3a8] sm:$0xff]
    %v1119 = vld [vmem:[#allocation6 + $0x3b0] sm:$0xff]
    %v1120 = vld [vmem:[#allocation6 + $0x3b8] sm:$0xff]
    %v1121 = vld [vmem:[#allocation6 + $0x3c0] sm:$0xff]
    %v1122 = vld [vmem:[#allocation6 + $0x3c8] sm:$0xff]
    %v1123 = vld [vmem:[#allocation6 + $0x3d0] sm:$0xff]
    %v1124 = vld [vmem:[#allocation6 + $0x3d8] sm:$0xff]
    %v1125 = vld [vmem:[#allocation6 + $0x3e0] sm:$0xff]
    %v1126 = vld [vmem:[#allocation6 + $0x3e8] sm:$0xff]
    %v1127 = vld [vmem:[#allocation6 + $0x3f0] sm:$0xff]
    %v1128 = vld [vmem:[#allocation6 + $0x3f8] sm:$0xff]
    %v1129 = vld [vmem:[#allocation6 + $0x400] sm:$0xff]
    %v1130 = vld [vmem:[#allocation6 + $0x408] sm:$0xff]
    %v1131 = vld [vmem:[#allocation6 + $0x410] sm:$0xff]
    %v1132 = vld [vmem:[#allocation6 + $0x418] sm:$0xff]
    %v1133 = vld [vmem:[#allocation6 + $0x420] sm:$0xff]
    %v1134 = vld [vmem:[#allocation6 + $0x428] sm:$0xff]
    %v1135 = vld [vmem:[#allocation6 + $0x430] sm:$0xff]
    %v1136 = vld [vmem:[#allocation6 + $0x438] sm:$0xff]
    %v1137 = vld [vmem:[#allocation6 + $0x440] sm:$0xff]
    %v1138 = vld [vmem:[#allocation6 + $0x448] sm:$0xff]
    %v1139 = vld [vmem:[#allocation6 + $0x450] sm:$0xff]
    %v1140 = vld [vmem:[#allocation6 + $0x458] sm:$0xff]
    %v1141 = vld [vmem:[#allocation6 + $0x460] sm:$0xff]
    %v1142 = vld [vmem:[#allocation6 + $0x468] sm:$0xff]
    %v1143 = vld [vmem:[#allocation6 + $0x470] sm:$0xff]
    %v1144 = vld [vmem:[#allocation6 + $0x478] sm:$0xff]
    %v1145 = vld [vmem:[#allocation6 + $0x480] sm:$0xff]
    %v1146 = vld [vmem:[#allocation6 + $0x488] sm:$0xff]
    %v1147 = vld [vmem:[#allocation6 + $0x490] sm:$0xff]
    %v1148 = vld [vmem:[#allocation6 + $0x498] sm:$0xff]
    %v1149 = vld [vmem:[#allocation6 + $0x4a0] sm:$0xff]
    %v1150 = vld [vmem:[#allocation6 + $0x4a8] sm:$0xff]
    %v1151 = vld [vmem:[#allocation6 + $0x4b0] sm:$0xff]
    %v1152 = vld [vmem:[#allocation6 + $0x4b8] sm:$0xff]
    %v1153 = vld [vmem:[#allocation6 + $0x4c0] sm:$0xff]
    %v1154 = vld [vmem:[#allocation6 + $0x4c8] sm:$0xff]
    %v1155 = vld [vmem:[#allocation6 + $0x4d0] sm:$0xff]
    %v1156 = vld [vmem:[#allocation6 + $0x4d8] sm:$0xff]
    %v1157 = vld [vmem:[#allocation6 + $0x4e0] sm:$0xff]
    %v1158 = vld [vmem:[#allocation6 + $0x4e8] sm:$0xff]
    %v1159 = vld [vmem:[#allocation6 + $0x4f0] sm:$0xff]
    %v1160 = vld [vmem:[#allocation6 + $0x4f8] sm:$0xff]
    %v1161 = vld [vmem:[#allocation6 + $0x500] sm:$0xff]
    %v1162 = vld [vmem:[#allocation6 + $0x508] sm:$0xff]
    %v1163 = vld [vmem:[#allocation6 + $0x510] sm:$0xff]
    %v1164 = vld [vmem:[#allocation6 + $0x518] sm:$0xff]
    %v1165 = vld [vmem:[#allocation6 + $0x520] sm:$0xff]
    %v1166 = vld [vmem:[#allocation6 + $0x528] sm:$0xff]
    %v1167 = vld [vmem:[#allocation6 + $0x530] sm:$0xff]
    %v1168 = vld [vmem:[#allocation6 + $0x538] sm:$0xff]
    %v1169 = vld [vmem:[#allocation6 + $0x540] sm:$0xff]
    %v1170 = vld [vmem:[#allocation6 + $0x548] sm:$0xff]
    %v1171 = vld [vmem:[#allocation6 + $0x550] sm:$0xff]
    %v1172 = vld [vmem:[#allocation6 + $0x558] sm:$0xff]
    %v1173 = vld [vmem:[#allocation6 + $0x560] sm:$0xff]
    %v1174 = vld [vmem:[#allocation6 + $0x568] sm:$0xff]
    %v1175 = vld [vmem:[#allocation6 + $0x570] sm:$0xff]
    %v1176 = vld [vmem:[#allocation6 + $0x578] sm:$0xff]
    %v1177 = vld [vmem:[#allocation6 + $0x580] sm:$0xff]
    %v1178 = vld [vmem:[#allocation6 + $0x588] sm:$0xff]
    %v1179 = vld [vmem:[#allocation6 + $0x590] sm:$0xff]
    %v1180 = vld [vmem:[#allocation6 + $0x598] sm:$0xff]
    %v1181 = vld [vmem:[#allocation6 + $0x5a0] sm:$0xff]
    %v1182 = vld [vmem:[#allocation6 + $0x5a8] sm:$0xff]
    %v1183 = vld [vmem:[#allocation6 + $0x5b0] sm:$0xff]
    %v1184 = vld [vmem:[#allocation6 + $0x5b8] sm:$0xff]
    %v1185 = vld [vmem:[#allocation6 + $0x5c0] sm:$0xff]
    %v1186 = vld [vmem:[#allocation6 + $0x5c8] sm:$0xff]
    %v1187 = vld [vmem:[#allocation6 + $0x5d0] sm:$0xff]
    %v1188 = vld [vmem:[#allocation6 + $0x5d8] sm:$0xff]
    %v1189 = vld [vmem:[#allocation6 + $0x5e0] sm:$0xff]
    %v1190 = vld [vmem:[#allocation6 + $0x5e8] sm:$0xff]
    %v1191 = vld [vmem:[#allocation6 + $0x5f0] sm:$0xff]
    %v1192 = vld [vmem:[#allocation6 + $0x5f8] sm:$0xff]
    %v1193 = vld [vmem:[#allocation6 + $0x600] sm:$0xff]
    %v1194 = vld [vmem:[#allocation6 + $0x608] sm:$0xff]
    %v1195 = vld [vmem:[#allocation6 + $0x610] sm:$0xff]
    %v1196 = vld [vmem:[#allocation6 + $0x618] sm:$0xff]
    %v1197 = vld [vmem:[#allocation6 + $0x620] sm:$0xff]
    %v1198 = vld [vmem:[#allocation6 + $0x628] sm:$0xff]
    %v1199 = vld [vmem:[#allocation6 + $0x630] sm:$0xff]
    %v1200 = vld [vmem:[#allocation6 + $0x638] sm:$0xff]
    %v1201 = vld [vmem:[#allocation6 + $0x640] sm:$0xff]
    %v1202 = vld [vmem:[#allocation6 + $0x648] sm:$0xff]
    %v1203 = vld [vmem:[#allocation6 + $0x650] sm:$0xff]
    %v1204 = vld [vmem:[#allocation6 + $0x658] sm:$0xff]
    %v1205 = vld [vmem:[#allocation6 + $0x660] sm:$0xff]
    %v1206 = vld [vmem:[#allocation6 + $0x668] sm:$0xff]
    %v1207 = vld [vmem:[#allocation6 + $0x670] sm:$0xff]
    %v1208 = vld [vmem:[#allocation6 + $0x678] sm:$0xff]
    %v1209 = vld [vmem:[#allocation6 + $0x680] sm:$0xff]
    %v1210 = vld [vmem:[#allocation6 + $0x688] sm:$0xff]
    %v1211 = vld [vmem:[#allocation6 + $0x690] sm:$0xff]
    %v1212 = vld [vmem:[#allocation6 + $0x698] sm:$0xff]
    %v1213 = vld [vmem:[#allocation6 + $0x6a0] sm:$0xff]
    %v1214 = vld [vmem:[#allocation6 + $0x6a8] sm:$0xff]
    %v1215 = vld [vmem:[#allocation6 + $0x6b0] sm:$0xff]
    %v1216 = vld [vmem:[#allocation6 + $0x6b8] sm:$0xff]
    %v1217 = vld [vmem:[#allocation6 + $0x6c0] sm:$0xff]
    %v1218 = vld [vmem:[#allocation6 + $0x6c8] sm:$0xff]
    %v1219 = vld [vmem:[#allocation6 + $0x6d0] sm:$0xff]
    %v1220 = vld [vmem:[#allocation6 + $0x6d8] sm:$0xff]
    %v1221 = vld [vmem:[#allocation6 + $0x6e0] sm:$0xff]
    %v1222 = vld [vmem:[#allocation6 + $0x6e8] sm:$0xff]
    %v1223 = vld [vmem:[#allocation6 + $0x6f0] sm:$0xff]
    %v1224 = vld [vmem:[#allocation6 + $0x6f8] sm:$0xff]
    %v1225 = vld [vmem:[#allocation6 + $0x700] sm:$0xff]
    %v1226 = vld [vmem:[#allocation6 + $0x708] sm:$0xff]
    %v1227 = vld [vmem:[#allocation6 + $0x710] sm:$0xff]
    %v1228 = vld [vmem:[#allocation6 + $0x718] sm:$0xff]
    %v1229 = vld [vmem:[#allocation6 + $0x720] sm:$0xff]
    %v1230 = vld [vmem:[#allocation6 + $0x728] sm:$0xff]
    %v1231 = vld [vmem:[#allocation6 + $0x730] sm:$0xff]
    %v1232 = vld [vmem:[#allocation6 + $0x738] sm:$0xff]
    %v1233 = vld [vmem:[#allocation6 + $0x740] sm:$0xff]
    %v1234 = vld [vmem:[#allocation6 + $0x748] sm:$0xff]
    %v1235 = vld [vmem:[#allocation6 + $0x750] sm:$0xff]
    %v1236 = vld [vmem:[#allocation6 + $0x758] sm:$0xff]
    %v1237 = vld [vmem:[#allocation6 + $0x760] sm:$0xff]
    %v1238 = vld [vmem:[#allocation6 + $0x768] sm:$0xff]
    %v1239 = vld [vmem:[#allocation6 + $0x770] sm:$0xff]
    %v1240 = vld [vmem:[#allocation6 + $0x778] sm:$0xff]
    %v1241 = vld [vmem:[#allocation6 + $0x780] sm:$0xff]
    %v1242 = vld [vmem:[#allocation6 + $0x788] sm:$0xff]
    %v1243 = vld [vmem:[#allocation6 + $0x790] sm:$0xff]
    %v1244 = vld [vmem:[#allocation6 + $0x798] sm:$0xff]
    %v1245 = vld [vmem:[#allocation6 + $0x7a0] sm:$0xff]
    %v1246 = vld [vmem:[#allocation6 + $0x7a8] sm:$0xff]
    %v1247 = vld [vmem:[#allocation6 + $0x7b0] sm:$0xff]
    %v1248 = vld [vmem:[#allocation6 + $0x7b8] sm:$0xff]
    %v1249 = vld [vmem:[#allocation6 + $0x7c0] sm:$0xff]
    %v1250 = vld [vmem:[#allocation6 + $0x7c8] sm:$0xff]
    %v1251 = vld [vmem:[#allocation6 + $0x7d0] sm:$0xff]
    %v1252 = vld [vmem:[#allocation6 + $0x7d8] sm:$0xff]
    %v1253 = vld [vmem:[#allocation6 + $0x7e0] sm:$0xff]
    %v1254 = vld [vmem:[#allocation6 + $0x7e8] sm:$0xff]
    %v1255 = vld [vmem:[#allocation6 + $0x7f0] sm:$0xff]
    %v1256 = vld [vmem:[#allocation6 + $0x7f8] sm:$0xff]
    %v1257 = vld [vmem:[#allocation6 + $0x800] sm:$0xff]
    %v1258 = vld [vmem:[#allocation6 + $0x808] sm:$0xff]
    %v1259 = vld [vmem:[#allocation6 + $0x810] sm:$0xff]
    %v1260 = vld [vmem:[#allocation6 + $0x818] sm:$0xff]
    %v1261 = vld [vmem:[#allocation6 + $0x820] sm:$0xff]
    %v1262 = vld [vmem:[#allocation6 + $0x828] sm:$0xff]
    %v1263 = vld [vmem:[#allocation6 + $0x830] sm:$0xff]
    %v1264 = vld [vmem:[#allocation6 + $0x838] sm:$0xff]
    %v1265 = vld [vmem:[#allocation6 + $0x840] sm:$0xff]
    %v1266 = vld [vmem:[#allocation6 + $0x848] sm:$0xff]
    %v1267 = vld [vmem:[#allocation6 + $0x850] sm:$0xff]
    %v1268 = vld [vmem:[#allocation6 + $0x858] sm:$0xff]
    %v1269 = vld [vmem:[#allocation6 + $0x860] sm:$0xff]
    %v1270 = vld [vmem:[#allocation6 + $0x868] sm:$0xff]
    %v1271 = vld [vmem:[#allocation6 + $0x870] sm:$0xff]
    %v1272 = vld [vmem:[#allocation6 + $0x878] sm:$0xff]
    %v1273 = vld [vmem:[#allocation6 + $0x880] sm:$0xff]
    %v1274 = vld [vmem:[#allocation6 + $0x888] sm:$0xff]
    %v1275 = vld [vmem:[#allocation6 + $0x890] sm:$0xff]
    %v1276 = vld [vmem:[#allocation6 + $0x898] sm:$0xff]
    %v1277 = vld [vmem:[#allocation6 + $0x8a0] sm:$0xff]
    %v1278 = vld [vmem:[#allocation6 + $0x8a8] sm:$0xff]
    %v1279 = vld [vmem:[#allocation6 + $0x8b0] sm:$0xff]
    %v1280 = vld [vmem:[#allocation6 + $0x8b8] sm:$0xff]
    %v1281 = vld [vmem:[#allocation6 + $0x8c0] sm:$0xff]
    %v1282 = vld [vmem:[#allocation6 + $0x8c8] sm:$0xff]
    %v1283 = vld [vmem:[#allocation6 + $0x8d0] sm:$0xff]
    %v1284 = vld [vmem:[#allocation6 + $0x8d8] sm:$0xff]
    %v1285 = vld [vmem:[#allocation6 + $0x8e0] sm:$0xff]
    %v1286 = vld [vmem:[#allocation6 + $0x8e8] sm:$0xff]
    %v1287 = vld [vmem:[#allocation6 + $0x8f0] sm:$0xff]
    %v1288 = vld [vmem:[#allocation6 + $0x8f8] sm:$0xff]
    %v1289 = vld [vmem:[#allocation6 + $0x900] sm:$0xff]
    %v1290 = vld [vmem:[#allocation6 + $0x908] sm:$0xff]
    %v1291 = vld [vmem:[#allocation6 + $0x910] sm:$0xff]
    %v1292 = vld [vmem:[#allocation6 + $0x918] sm:$0xff]
    %v1293 = vld [vmem:[#allocation6 + $0x920] sm:$0xff]
    %v1294 = vld [vmem:[#allocation6 + $0x928] sm:$0xff]
    %v1295 = vld [vmem:[#allocation6 + $0x930] sm:$0xff]
    %v1296 = vld [vmem:[#allocation6 + $0x938] sm:$0xff]
    %v1297 = vld [vmem:[#allocation6 + $0x940] sm:$0xff]
    %v1298 = vld [vmem:[#allocation6 + $0x948] sm:$0xff]
    %v1299 = vld [vmem:[#allocation6 + $0x950] sm:$0xff]
    %v1300 = vld [vmem:[#allocation6 + $0x958] sm:$0xff]
    %v1301 = vld [vmem:[#allocation6 + $0x960] sm:$0xff]
    %v1302 = vld [vmem:[#allocation6 + $0x968] sm:$0xff]
    %v1303 = vld [vmem:[#allocation6 + $0x970] sm:$0xff]
    %v1304 = vld [vmem:[#allocation6 + $0x978] sm:$0xff]
    %v1305 = vld [vmem:[#allocation6 + $0x980] sm:$0xff]
    %v1306 = vld [vmem:[#allocation6 + $0x988] sm:$0xff]
    %v1307 = vld [vmem:[#allocation6 + $0x990] sm:$0xff]
    %v1308 = vld [vmem:[#allocation6 + $0x998] sm:$0xff]
    %v1309 = vld [vmem:[#allocation6 + $0x9a0] sm:$0xff]
    %v1310 = vld [vmem:[#allocation6 + $0x9a8] sm:$0xff]
    %v1311 = vld [vmem:[#allocation6 + $0x9b0] sm:$0xff]
    %v1312 = vld [vmem:[#allocation6 + $0x9b8] sm:$0xff]
    %v1313 = vld [vmem:[#allocation6 + $0x9c0] sm:$0xff]
    %v1314 = vld [vmem:[#allocation6 + $0x9c8] sm:$0xff]
    %v1315 = vld [vmem:[#allocation6 + $0x9d0] sm:$0xff]
    %v1316 = vld [vmem:[#allocation6 + $0x9d8] sm:$0xff]
    %v1317 = vld [vmem:[#allocation6 + $0x9e0] sm:$0xff]
    %v1318 = vld [vmem:[#allocation6 + $0x9e8] sm:$0xff]
    %v1319 = vld [vmem:[#allocation6 + $0x9f0] sm:$0xff]
    %v1320 = vld [vmem:[#allocation6 + $0x9f8] sm:$0xff]
    %v1321 = vld [vmem:[#allocation6 + $0xa00] sm:$0xff]
    %v1322 = vld [vmem:[#allocation6 + $0xa08] sm:$0xff]
    %v1323 = vld [vmem:[#allocation6 + $0xa10] sm:$0xff]
    %v1324 = vld [vmem:[#allocation6 + $0xa18] sm:$0xff]
    %v1325 = vld [vmem:[#allocation4] sm:$0x1]
    %v1327 = vlaneseq
    %v1328 = vshrl.u32 %v1327, 7
    %v1329 = vsub.s32 0, %v1328
    %v1330 = vrot.slane %v1325, %v1329
    %1332 = vmatprep.subr.mxu0 0.0
    %1333 = vmatpush1.msra.mxu0 %v358
    %1334 = vmatprep.subr.mxu0 0.0
    %1335 = vmatpush1.msra.mxu0 %v353
    %1336 = vmatprep.subr.mxu0 0.0
    %1337 = vmatpush1.msra.mxu0 %v348
    %1338 = vmatprep.subr.mxu0 0.0
    %1339 = vmatpush1.msra.mxu0 %v343
    %1340 = vmatprep.subr.mxu0 0.0
    %1341 = vmatpush1.msra.mxu0 %v338
    %1342 = vmatprep.subr.mxu0 0.0
    %1343 = vmatpush1.msra.mxu0 %v333
    %1344 = vmatprep.subr.mxu0 0.0
    %1345 = vmatpush1.msra.mxu0 %v328
    %1346 = vmatprep.subr.mxu0 0.0
    %1347 = vmatpush1.msra.mxu0 %v323
    %1348 = vmatprep.subr.mxu0 0.0
    %1349 = vmatpush1.msra.mxu0 %v318
    %1350 = vmatprep.subr.mxu0 0.0
    %1351 = vmatpush1.msra.mxu0 %v313
    %1352 = vmatprep.subr.mxu0 0.0
    %1353 = vmatpush1.msra.mxu0 %v308
    %1354 = vmatprep.subr.mxu0 0.0
    %1355 = vmatpush1.msra.mxu0 %v303
    %1356 = vmatprep.subr.mxu0 0.0
    %1357 = vmatpush1.msra.mxu0 %v298
    %1358 = vmatprep.subr.mxu0 0.0
    %1359 = vmatpush1.msra.mxu0 %v293
    %1360 = vmatprep.subr.mxu0 0.0
    %1361 = vmatpush1.msra.mxu0 %v288
    %1362 = vmatprep.subr.mxu0 0.0
    %1363 = vmatpush1.msra.mxu0 %v283
    %1364 = vmatprep.subr.mxu0 0.0
    %1365 = vmatpush2.msra.mxu0 %v438
    %1366 = vmatprep.subr.mxu0 0.0
    %1367 = vmatpush2.msra.mxu0 %v433
    %1368 = vmatprep.subr.mxu0 0.0
    %1369 = vmatpush2.msra.mxu0 %v428
    %1370 = vmatprep.subr.mxu0 0.0
    %1371 = vmatpush2.msra.mxu0 %v423
    %1372 = vmatprep.subr.mxu0 0.0
    %1373 = vmatpush2.msra.mxu0 %v418
    %1374 = vmatprep.subr.mxu0 0.0
    %1375 = vmatpush2.msra.mxu0 %v413
    %1376 = vmatprep.subr.mxu0 0.0
    %1377 = vmatpush2.msra.mxu0 %v408
    %1378 = vmatprep.subr.mxu0 0.0
    %1379 = vmatpush2.msra.mxu0 %v403
    %1380 = vmatprep.subr.mxu0 0.0
    %1381 = vmatpush2.msra.mxu0 %v398
    %1382 = vmatprep.subr.mxu0 0.0
    %1383 = vmatpush2.msra.mxu0 %v393
    %1384 = vmatprep.subr.mxu0 0.0
    %1385 = vmatpush2.msra.mxu0 %v388
    %1386 = vmatprep.subr.mxu0 0.0
    %1387 = vmatpush2.msra.mxu0 %v383
    %1388 = vmatprep.subr.mxu0 0.0
    %1389 = vmatpush2.msra.mxu0 %v378
    %1390 = vmatprep.subr.mxu0 0.0
    %1391 = vmatpush2.msra.mxu0 %v373
    %1392 = vmatprep.subr.mxu0 0.0
    %1393 = vmatpush2.msra.mxu0 %v368
    %1394 = vmatprep.subr.mxu0 0.0
    %1395 = vmatpush2.msra.mxu0 %v363
    %1396 = vmatprep.mubr.f32.mxu0 %v1002
    %1397 = vmatmul.mubr.f32.gmra.mxu0 %v1001
    %v1398 = vpop.f32.mrf.mxu0
    %v1399 = vadd.f32 %v1330, %v1398
    %v1400 = vpop.f32.mrf.mxu0
    %1401 = vmatprep.mubr.f32.mxu0 %v1011
    %1402 = vmatmul.mubr.f32.gmra.mxu0 %v1010
    %v1403 = vpop.f32.mrf.mxu0
    %v1404 = vadd.f32 %v1330, %v1403
    %v1405 = vpop.f32.mrf.mxu0
    %1406 = vmatprep.mubr.f32.mxu0 %v1020
    %1407 = vmatmul.mubr.f32.gmra.mxu0 %v1019
    %v1408 = vpop.f32.mrf.mxu0
    %v1409 = vadd.f32 %v1330, %v1408
    %v1410 = vpop.f32.mrf.mxu0
    %1411 = vmatprep.mubr.f32.mxu0 %v1029
    %1412 = vmatmul.mubr.f32.gmra.mxu0 %v1028
    %v1413 = vpop.f32.mrf.mxu0
    %v1414 = vadd.f32 %v1330, %v1413
    %v1415 = vpop.f32.mrf.mxu0
    %1416 = vmatprep.mubr.f32.mxu0 %v1038
    %1417 = vmatmul.mubr.f32.gmra.mxu0 %v1037
    %v1418 = vpop.f32.mrf.mxu0
    %v1419 = vadd.f32 %v1330, %v1418
    %v1420 = vpop.f32.mrf.mxu0
    %1421 = vmatprep.mubr.f32.mxu0 %v1047
    %1422 = vmatmul.mubr.f32.gmra.mxu0 %v1046
    %v1423 = vpop.f32.mrf.mxu0
    %v1424 = vadd.f32 %v1330, %v1423
    %v1425 = vpop.f32.mrf.mxu0
    %1426 = vmatprep.mubr.f32.mxu0 %v1056
    %1427 = vmatmul.mubr.f32.gmra.mxu0 %v1055
    %v1428 = vpop.f32.mrf.mxu0
    %v1429 = vadd.f32 %v1330, %v1428
    %v1430 = vpop.f32.mrf.mxu0
    %1431 = vmatprep.mubr.f32.mxu0 %v1065
    %1432 = vmatmul.mubr.f32.gmra.mxu0 %v1064
    %v1433 = vpop.f32.mrf.mxu0
    %v1434 = vadd.f32 %v1330, %v1433
    %v1435 = vpop.f32.mrf.mxu0
    %1436 = vmatprep.mubr.f32.mxu0 %v1074
    %1437 = vmatmul.mubr.f32.gmra.mxu0 %v1073
    %v1438 = vpop.f32.mrf.mxu0
    %v1439 = vadd.f32 %v1330, %v1438
    %v1440 = vpop.f32.mrf.mxu0
    %1441 = vmatprep.mubr.f32.mxu0 %v1083
    %1442 = vmatmul.mubr.f32.gmra.mxu0 %v1082
    %v1443 = vpop.f32.mrf.mxu0
    %v1444 = vadd.f32 %v1330, %v1443
    %v1445 = vpop.f32.mrf.mxu0
    %1446 = vmatprep.mubr.f32.mxu0 %v1092
    %1447 = vmatmul.mubr.f32.gmra.mxu0 %v1091
    %v1448 = vpop.f32.mrf.mxu0
    %v1449 = vadd.f32 %v1330, %v1448
    %v1450 = vpop.f32.mrf.mxu0
    %1451 = vmatprep.mubr.f32.mxu0 %v1101
    %1452 = vmatmul.mubr.f32.gmra.mxu0 %v1100
    %v1453 = vpop.f32.mrf.mxu0
    %v1454 = vadd.f32 %v1330, %v1453
    %v1455 = vpop.f32.mrf.mxu0
    %1456 = vmatprep.mubr.f32.mxu0 %v1110
    %1457 = vmatmul.mubr.f32.gmra.mxu0 %v1109
    %v1458 = vpop.f32.mrf.mxu0
    %v1459 = vadd.f32 %v1330, %v1458
    %v1460 = vpop.f32.mrf.mxu0
    %1461 = vmatprep.mubr.f32.mxu0 %v1119
    %1462 = vmatmul.mubr.f32.gmra.mxu0 %v1118
    %v1463 = vpop.f32.mrf.mxu0
    %v1464 = vadd.f32 %v1330, %v1463
    %v1465 = vpop.f32.mrf.mxu0
    %1466 = vmatprep.mubr.f32.mxu0 %v1128
    %1467 = vmatmul.mubr.f32.gmra.mxu0 %v1127
    %v1468 = vpop.f32.mrf.mxu0
    %v1469 = vadd.f32 %v1330, %v1468
    %v1470 = vpop.f32.mrf.mxu0
    %1471 = vmatprep.mubr.f32.mxu0 %v1137
    %1472 = vmatmul.mubr.f32.gmra.mxu0 %v1136
    %v1473 = vpop.f32.mrf.mxu0
    %v1474 = vadd.f32 %v1330, %v1473
    %v1475 = vpop.f32.mrf.mxu0
    %1476 = vmatprep.mubr.f32.mxu0 %v1146
    %1477 = vmatmul.mubr.f32.gmra.mxu0 %v1145
    %v1478 = vpop.f32.mrf.mxu0
    %v1479 = vadd.f32 %v1330, %v1478
    %v1480 = vpop.f32.mrf.mxu0
    %1481 = vmatprep.mubr.f32.mxu0 %v1155
    %1482 = vmatmul.mubr.f32.gmra.mxu0 %v1154
    %v1483 = vpop.f32.mrf.mxu0
    %v1484 = vadd.f32 %v1330, %v1483
    %v1485 = vpop.f32.mrf.mxu0
    %1486 = vmatprep.mubr.f32.mxu0 %v1164
    %1487 = vmatmul.mubr.f32.gmra.mxu0 %v1163
    %v1488 = vpop.f32.mrf.mxu0
    %v1489 = vadd.f32 %v1330, %v1488
    %v1490 = vpop.f32.mrf.mxu0
    %1491 = vmatprep.mubr.f32.mxu0 %v1173
    %1492 = vmatmul.mubr.f32.gmra.mxu0 %v1172
    %v1493 = vpop.f32.mrf.mxu0
    %v1494 = vadd.f32 %v1330, %v1493
    %v1495 = vpop.f32.mrf.mxu0
    %1496 = vmatprep.mubr.f32.mxu0 %v1182
    %1497 = vmatmul.mubr.f32.gmra.mxu0 %v1181
    %v1498 = vpop.f32.mrf.mxu0
    %v1499 = vadd.f32 %v1330, %v1498
    %v1500 = vpop.f32.mrf.mxu0
    %1501 = vmatprep.mubr.f32.mxu0 %v1191
    %1502 = vmatmul.mubr.f32.gmra.mxu0 %v1190
    %v1503 = vpop.f32.mrf.mxu0
    %v1504 = vadd.f32 %v1330, %v1503
    %v1505 = vpop.f32.mrf.mxu0
    %1506 = vmatprep.mubr.f32.mxu0 %v1200
    %1507 = vmatmul.mubr.f32.gmra.mxu0 %v1199
    %v1508 = vpop.f32.mrf.mxu0
    %v1509 = vadd.f32 %v1330, %v1508
    %v1510 = vpop.f32.mrf.mxu0
    %1511 = vmatprep.mubr.f32.mxu0 %v1209
    %1512 = vmatmul.mubr.f32.gmra.mxu0 %v1208
    %v1513 = vpop.f32.mrf.mxu0
    %v1514 = vadd.f32 %v1330, %v1513
    %v1515 = vpop.f32.mrf.mxu0
    %1516 = vmatprep.mubr.f32.mxu0 %v1218
    %1517 = vmatmul.mubr.f32.gmra.mxu0 %v1217
    %v1518 = vpop.f32.mrf.mxu0
    %v1519 = vadd.f32 %v1330, %v1518
    %v1520 = vpop.f32.mrf.mxu0
    %1521 = vmatprep.mubr.f32.mxu0 %v1227
    %1522 = vmatmul.mubr.f32.gmra.mxu0 %v1226
    %v1523 = vpop.f32.mrf.mxu0
    %v1524 = vadd.f32 %v1330, %v1523
    %v1525 = vpop.f32.mrf.mxu0
    %1526 = vmatprep.mubr.f32.mxu0 %v1236
    %1527 = vmatmul.mubr.f32.gmra.mxu0 %v1235
    %v1528 = vpop.f32.mrf.mxu0
    %v1529 = vadd.f32 %v1330, %v1528
    %v1530 = vpop.f32.mrf.mxu0
    %1531 = vmatprep.mubr.f32.mxu0 %v1245
    %1532 = vmatmul.mubr.f32.gmra.mxu0 %v1244
    %v1533 = vpop.f32.mrf.mxu0
    %v1534 = vadd.f32 %v1330, %v1533
    %v1535 = vpop.f32.mrf.mxu0
    %1536 = vmatprep.mubr.f32.mxu0 %v1254
    %1537 = vmatmul.mubr.f32.gmra.mxu0 %v1253
    %v1538 = vpop.f32.mrf.mxu0
    %v1539 = vadd.f32 %v1330, %v1538
    %v1540 = vpop.f32.mrf.mxu0
    %1541 = vmatprep.mubr.f32.mxu0 %v1263
    %1542 = vmatmul.mubr.f32.gmra.mxu0 %v1262
    %v1543 = vpop.f32.mrf.mxu0
    %v1544 = vadd.f32 %v1330, %v1543
    %v1545 = vpop.f32.mrf.mxu0
    %1546 = vmatprep.mubr.f32.mxu0 %v1272
    %1547 = vmatmul.mubr.f32.gmra.mxu0 %v1271
    %v1548 = vpop.f32.mrf.mxu0
    %v1549 = vadd.f32 %v1330, %v1548
    %v1550 = vpop.f32.mrf.mxu0
    %1551 = vmatprep.mubr.f32.mxu0 %v1281
    %1552 = vmatmul.mubr.f32.gmra.mxu0 %v1280
    %v1553 = vpop.f32.mrf.mxu0
    %v1554 = vadd.f32 %v1330, %v1553
    %v1555 = vpop.f32.mrf.mxu0
    %1556 = vmatprep.mubr.f32.mxu0 %v1290
    %1557 = vmatmul.mubr.f32.gmra.mxu0 %v1289
    %v1558 = vpop.f32.mrf.mxu0
    %v1559 = vadd.f32 %v1330, %v1558
    %v1560 = vpop.f32.mrf.mxu0
    %1561 = vmatprep.mubr.f32.mxu0 %v1299
    %1562 = vmatmul.mubr.f32.gmra.mxu0 %v1298
    %v1563 = vpop.f32.mrf.mxu0
    %v1564 = vadd.f32 %v1330, %v1563
    %v1565 = vpop.f32.mrf.mxu0
    %1566 = vmatprep.mubr.f32.mxu0 %v1308
    %1567 = vmatmul.mubr.f32.gmra.mxu0 %v1307
    %v1568 = vpop.f32.mrf.mxu0
    %v1569 = vadd.f32 %v1330, %v1568
    %v1570 = vpop.f32.mrf.mxu0
    %1571 = vmatprep.mubr.f32.mxu0 %v1317
    %1572 = vmatmul.mubr.f32.gmra.mxu0 %v1316
    %v1573 = vpop.f32.mrf.mxu0
    %v1574 = vadd.f32 %v1330, %v1573
    %v1575 = vpop.f32.mrf.mxu0
    %1576 = vdwg.mxu0
    %1577 = vmatprep.subr.mxu0 0.0
    %1578 = vmatpush1.msra.mxu0 %v518
    %1579 = vmatprep.subr.mxu0 0.0
    %1580 = vmatpush1.msra.mxu0 %v513
    %1581 = vmatprep.subr.mxu0 0.0
    %1582 = vmatpush1.msra.mxu0 %v508
    %1583 = vmatprep.subr.mxu0 0.0
    %1584 = vmatpush1.msra.mxu0 %v503
    %1585 = vmatprep.subr.mxu0 0.0
    %1586 = vmatpush1.msra.mxu0 %v498
    %1587 = vmatprep.subr.mxu0 0.0
    %1588 = vmatpush1.msra.mxu0 %v493
    %1589 = vmatprep.subr.mxu0 0.0
    %1590 = vmatpush1.msra.mxu0 %v488
    %1591 = vmatprep.subr.mxu0 0.0
    %1592 = vmatpush1.msra.mxu0 %v483
    %1593 = vmatprep.subr.mxu0 0.0
    %1594 = vmatpush1.msra.mxu0 %v478
    %1595 = vmatprep.subr.mxu0 0.0
    %1596 = vmatpush1.msra.mxu0 %v473
    %1597 = vmatprep.subr.mxu0 0.0
    %1598 = vmatpush1.msra.mxu0 %v468
    %1599 = vmatprep.subr.mxu0 0.0
    %1600 = vmatpush1.msra.mxu0 %v463
    %1601 = vmatprep.subr.mxu0 0.0
    %1602 = vmatpush1.msra.mxu0 %v458
    %1603 = vmatprep.subr.mxu0 0.0
    %1604 = vmatpush1.msra.mxu0 %v453
    %1605 = vmatprep.subr.mxu0 0.0
    %1606 = vmatpush1.msra.mxu0 %v448
    %1607 = vmatprep.subr.mxu0 0.0
    %1608 = vmatpush1.msra.mxu0 %v443
    %1609 = vmatprep.subr.mxu0 0.0
    %1610 = vmatpush2.msra.mxu0 %v598
    %1611 = vmatprep.subr.mxu0 0.0
    %1612 = vmatpush2.msra.mxu0 %v593
    %1613 = vmatprep.subr.mxu0 0.0
    %1614 = vmatpush2.msra.mxu0 %v588
    %1615 = vmatprep.subr.mxu0 0.0
    %1616 = vmatpush2.msra.mxu0 %v583
    %1617 = vmatprep.subr.mxu0 0.0
    %1618 = vmatpush2.msra.mxu0 %v578
    %1619 = vmatprep.subr.mxu0 0.0
    %1620 = vmatpush2.msra.mxu0 %v573
    %1621 = vmatprep.subr.mxu0 0.0
    %1622 = vmatpush2.msra.mxu0 %v568
    %1623 = vmatprep.subr.mxu0 0.0
    %1624 = vmatpush2.msra.mxu0 %v563
    %1625 = vmatprep.subr.mxu0 0.0
    %1626 = vmatpush2.msra.mxu0 %v558
    %1627 = vmatprep.subr.mxu0 0.0
    %1628 = vmatpush2.msra.mxu0 %v553
    %1629 = vmatprep.subr.mxu0 0.0
    %1630 = vmatpush2.msra.mxu0 %v548
    %1631 = vmatprep.subr.mxu0 0.0
    %1632 = vmatpush2.msra.mxu0 %v543
    %1633 = vmatprep.subr.mxu0 0.0
    %1634 = vmatpush2.msra.mxu0 %v538
    %1635 = vmatprep.subr.mxu0 0.0
    %1636 = vmatpush2.msra.mxu0 %v533
    %1637 = vmatprep.subr.mxu0 0.0
    %1638 = vmatpush2.msra.mxu0 %v528
    %1639 = vmatprep.subr.mxu0 0.0
    %1640 = vmatpush2.msra.mxu0 %v523
    %1641 = vmatprep.mubr.f32.mxu0 %v1004
    %1642 = vmatmul.mubr.f32.gmra.mxu0 %v1003
    %v1643 = vpop.f32.mrf.mxu0
    %v1644 = vadd.f32 %v1399, %v1643
    %v1645 = vpop.f32.mrf.mxu0
    %1646 = vmatprep.mubr.f32.mxu0 %v1013
    %1647 = vmatmul.mubr.f32.gmra.mxu0 %v1012
    %v1648 = vpop.f32.mrf.mxu0
    %v1649 = vadd.f32 %v1404, %v1648
    %v1650 = vpop.f32.mrf.mxu0
    %1651 = vmatprep.mubr.f32.mxu0 %v1022
    %1652 = vmatmul.mubr.f32.gmra.mxu0 %v1021
    %v1653 = vpop.f32.mrf.mxu0
    %v1654 = vadd.f32 %v1409, %v1653
    %v1655 = vpop.f32.mrf.mxu0
    %1656 = vmatprep.mubr.f32.mxu0 %v1031
    %1657 = vmatmul.mubr.f32.gmra.mxu0 %v1030
    %v1658 = vpop.f32.mrf.mxu0
    %v1659 = vadd.f32 %v1414, %v1658
    %v1660 = vpop.f32.mrf.mxu0
    %1661 = vmatprep.mubr.f32.mxu0 %v1040
    %1662 = vmatmul.mubr.f32.gmra.mxu0 %v1039
    %v1663 = vpop.f32.mrf.mxu0
    %v1664 = vadd.f32 %v1419, %v1663
    %v1665 = vpop.f32.mrf.mxu0
    %1666 = vmatprep.mubr.f32.mxu0 %v1049
    %1667 = vmatmul.mubr.f32.gmra.mxu0 %v1048
    %v1668 = vpop.f32.mrf.mxu0
    %v1669 = vadd.f32 %v1424, %v1668
    %v1670 = vpop.f32.mrf.mxu0
    %1671 = vmatprep.mubr.f32.mxu0 %v1058
    %1672 = vmatmul.mubr.f32.gmra.mxu0 %v1057
    %v1673 = vpop.f32.mrf.mxu0
    %v1674 = vadd.f32 %v1429, %v1673
    %v1675 = vpop.f32.mrf.mxu0
    %1676 = vmatprep.mubr.f32.mxu0 %v1067
    %1677 = vmatmul.mubr.f32.gmra.mxu0 %v1066
    %v1678 = vpop.f32.mrf.mxu0
    %v1679 = vadd.f32 %v1434, %v1678
    %v1680 = vpop.f32.mrf.mxu0
    %1681 = vmatprep.mubr.f32.mxu0 %v1076
    %1682 = vmatmul.mubr.f32.gmra.mxu0 %v1075
    %v1683 = vpop.f32.mrf.mxu0
    %v1684 = vadd.f32 %v1439, %v1683
    %v1685 = vpop.f32.mrf.mxu0
    %1686 = vmatprep.mubr.f32.mxu0 %v1085
    %1687 = vmatmul.mubr.f32.gmra.mxu0 %v1084
    %v1688 = vpop.f32.mrf.mxu0
    %v1689 = vadd.f32 %v1444, %v1688
    %v1690 = vpop.f32.mrf.mxu0
    %1691 = vmatprep.mubr.f32.mxu0 %v1094
    %1692 = vmatmul.mubr.f32.gmra.mxu0 %v1093
    %v1693 = vpop.f32.mrf.mxu0
    %v1694 = vadd.f32 %v1449, %v1693
    %v1695 = vpop.f32.mrf.mxu0
    %1696 = vmatprep.mubr.f32.mxu0 %v1103
    %1697 = vmatmul.mubr.f32.gmra.mxu0 %v1102
    %v1698 = vpop.f32.mrf.mxu0
    %v1699 = vadd.f32 %v1454, %v1698
    %v1700 = vpop.f32.mrf.mxu0
    %1701 = vmatprep.mubr.f32.mxu0 %v1112
    %1702 = vmatmul.mubr.f32.gmra.mxu0 %v1111
    %v1703 = vpop.f32.mrf.mxu0
    %v1704 = vadd.f32 %v1459, %v1703
    %v1705 = vpop.f32.mrf.mxu0
    %1706 = vmatprep.mubr.f32.mxu0 %v1121
    %1707 = vmatmul.mubr.f32.gmra.mxu0 %v1120
    %v1708 = vpop.f32.mrf.mxu0
    %v1709 = vadd.f32 %v1464, %v1708
    %v1710 = vpop.f32.mrf.mxu0
    %1711 = vmatprep.mubr.f32.mxu0 %v1130
    %1712 = vmatmul.mubr.f32.gmra.mxu0 %v1129
    %v1713 = vpop.f32.mrf.mxu0
    %v1714 = vadd.f32 %v1469, %v1713
    %v1715 = vpop.f32.mrf.mxu0
    %1716 = vmatprep.mubr.f32.mxu0 %v1139
    %1717 = vmatmul.mubr.f32.gmra.mxu0 %v1138
    %v1718 = vpop.f32.mrf.mxu0
    %v1719 = vadd.f32 %v1474, %v1718
    %v1720 = vpop.f32.mrf.mxu0
    %1721 = vmatprep.mubr.f32.mxu0 %v1148
    %1722 = vmatmul.mubr.f32.gmra.mxu0 %v1147
    %v1723 = vpop.f32.mrf.mxu0
    %v1724 = vadd.f32 %v1479, %v1723
    %v1725 = vpop.f32.mrf.mxu0
    %1726 = vmatprep.mubr.f32.mxu0 %v1157
    %1727 = vmatmul.mubr.f32.gmra.mxu0 %v1156
    %v1728 = vpop.f32.mrf.mxu0
    %v1729 = vadd.f32 %v1484, %v1728
    %v1730 = vpop.f32.mrf.mxu0
    %1731 = vmatprep.mubr.f32.mxu0 %v1166
    %1732 = vmatmul.mubr.f32.gmra.mxu0 %v1165
    %v1733 = vpop.f32.mrf.mxu0
    %v1734 = vadd.f32 %v1489, %v1733
    %v1735 = vpop.f32.mrf.mxu0
    %1736 = vmatprep.mubr.f32.mxu0 %v1175
    %1737 = vmatmul.mubr.f32.gmra.mxu0 %v1174
    %v1738 = vpop.f32.mrf.mxu0
    %v1739 = vadd.f32 %v1494, %v1738
    %v1740 = vpop.f32.mrf.mxu0
    %1741 = vmatprep.mubr.f32.mxu0 %v1184
    %1742 = vmatmul.mubr.f32.gmra.mxu0 %v1183
    %v1743 = vpop.f32.mrf.mxu0
    %v1744 = vadd.f32 %v1499, %v1743
    %v1745 = vpop.f32.mrf.mxu0
    %1746 = vmatprep.mubr.f32.mxu0 %v1193
    %1747 = vmatmul.mubr.f32.gmra.mxu0 %v1192
    %v1748 = vpop.f32.mrf.mxu0
    %v1749 = vadd.f32 %v1504, %v1748
    %v1750 = vpop.f32.mrf.mxu0
    %1751 = vmatprep.mubr.f32.mxu0 %v1202
    %1752 = vmatmul.mubr.f32.gmra.mxu0 %v1201
    %v1753 = vpop.f32.mrf.mxu0
    %v1754 = vadd.f32 %v1509, %v1753
    %v1755 = vpop.f32.mrf.mxu0
    %1756 = vmatprep.mubr.f32.mxu0 %v1211
    %1757 = vmatmul.mubr.f32.gmra.mxu0 %v1210
    %v1758 = vpop.f32.mrf.mxu0
    %v1759 = vadd.f32 %v1514, %v1758
    %v1760 = vpop.f32.mrf.mxu0
    %1761 = vmatprep.mubr.f32.mxu0 %v1220
    %1762 = vmatmul.mubr.f32.gmra.mxu0 %v1219
    %v1763 = vpop.f32.mrf.mxu0
    %v1764 = vadd.f32 %v1519, %v1763
    %v1765 = vpop.f32.mrf.mxu0
    %1766 = vmatprep.mubr.f32.mxu0 %v1229
    %1767 = vmatmul.mubr.f32.gmra.mxu0 %v1228
    %v1768 = vpop.f32.mrf.mxu0
    %v1769 = vadd.f32 %v1524, %v1768
    %v1770 = vpop.f32.mrf.mxu0
    %1771 = vmatprep.mubr.f32.mxu0 %v1238
    %1772 = vmatmul.mubr.f32.gmra.mxu0 %v1237
    %v1773 = vpop.f32.mrf.mxu0
    %v1774 = vadd.f32 %v1529, %v1773
    %v1775 = vpop.f32.mrf.mxu0
    %1776 = vmatprep.mubr.f32.mxu0 %v1247
    %1777 = vmatmul.mubr.f32.gmra.mxu0 %v1246
    %v1778 = vpop.f32.mrf.mxu0
    %v1779 = vadd.f32 %v1534, %v1778
    %v1780 = vpop.f32.mrf.mxu0
    %1781 = vmatprep.mubr.f32.mxu0 %v1256
    %1782 = vmatmul.mubr.f32.gmra.mxu0 %v1255
    %v1783 = vpop.f32.mrf.mxu0
    %v1784 = vadd.f32 %v1539, %v1783
    %v1785 = vpop.f32.mrf.mxu0
    %1786 = vmatprep.mubr.f32.mxu0 %v1265
    %1787 = vmatmul.mubr.f32.gmra.mxu0 %v1264
    %v1788 = vpop.f32.mrf.mxu0
    %v1789 = vadd.f32 %v1544, %v1788
    %v1790 = vpop.f32.mrf.mxu0
    %1791 = vmatprep.mubr.f32.mxu0 %v1274
    %1792 = vmatmul.mubr.f32.gmra.mxu0 %v1273
    %v1793 = vpop.f32.mrf.mxu0
    %v1794 = vadd.f32 %v1549, %v1793
    %v1795 = vpop.f32.mrf.mxu0
    %1796 = vmatprep.mubr.f32.mxu0 %v1283
    %1797 = vmatmul.mubr.f32.gmra.mxu0 %v1282
    %v1798 = vpop.f32.mrf.mxu0
    %v1799 = vadd.f32 %v1554, %v1798
    %v1800 = vpop.f32.mrf.mxu0
    %1801 = vmatprep.mubr.f32.mxu0 %v1292
    %1802 = vmatmul.mubr.f32.gmra.mxu0 %v1291
    %v1803 = vpop.f32.mrf.mxu0
    %v1804 = vadd.f32 %v1559, %v1803
    %v1805 = vpop.f32.mrf.mxu0
    %1806 = vmatprep.mubr.f32.mxu0 %v1301
    %1807 = vmatmul.mubr.f32.gmra.mxu0 %v1300
    %v1808 = vpop.f32.mrf.mxu0
    %v1809 = vadd.f32 %v1564, %v1808
    %v1810 = vpop.f32.mrf.mxu0
    %1811 = vmatprep.mubr.f32.mxu0 %v1310
    %1812 = vmatmul.mubr.f32.gmra.mxu0 %v1309
    %v1813 = vpop.f32.mrf.mxu0
    %v1814 = vadd.f32 %v1569, %v1813
    %v1815 = vpop.f32.mrf.mxu0
    %1816 = vmatprep.mubr.f32.mxu0 %v1319
    %1817 = vmatmul.mubr.f32.gmra.mxu0 %v1318
    %v1818 = vpop.f32.mrf.mxu0
    %v1819 = vadd.f32 %v1574, %v1818
    %v1820 = vpop.f32.mrf.mxu0
    %1821 = vdwg.mxu0
    %1822 = vmatprep.subr.mxu0 0.0
    %1823 = vmatpush1.msra.mxu0 %v678
    %1824 = vmatprep.subr.mxu0 0.0
    %1825 = vmatpush1.msra.mxu0 %v673
    %1826 = vmatprep.subr.mxu0 0.0
    %1827 = vmatpush1.msra.mxu0 %v668
    %1828 = vmatprep.subr.mxu0 0.0
    %1829 = vmatpush1.msra.mxu0 %v663
    %1830 = vmatprep.subr.mxu0 0.0
    %1831 = vmatpush1.msra.mxu0 %v658
    %1832 = vmatprep.subr.mxu0 0.0
    %1833 = vmatpush1.msra.mxu0 %v653
    %1834 = vmatprep.subr.mxu0 0.0
    %1835 = vmatpush1.msra.mxu0 %v648
    %1836 = vmatprep.subr.mxu0 0.0
    %1837 = vmatpush1.msra.mxu0 %v643
    %1838 = vmatprep.subr.mxu0 0.0
    %1839 = vmatpush1.msra.mxu0 %v638
    %1840 = vmatprep.subr.mxu0 0.0
    %1841 = vmatpush1.msra.mxu0 %v633
    %1842 = vmatprep.subr.mxu0 0.0
    %1843 = vmatpush1.msra.mxu0 %v628
    %1844 = vmatprep.subr.mxu0 0.0
    %1845 = vmatpush1.msra.mxu0 %v623
    %1846 = vmatprep.subr.mxu0 0.0
    %1847 = vmatpush1.msra.mxu0 %v618
    %1848 = vmatprep.subr.mxu0 0.0
    %1849 = vmatpush1.msra.mxu0 %v613
    %1850 = vmatprep.subr.mxu0 0.0
    %1851 = vmatpush1.msra.mxu0 %v608
    %1852 = vmatprep.subr.mxu0 0.0
    %1853 = vmatpush1.msra.mxu0 %v603
    %1854 = vmatprep.subr.mxu0 0.0
    %1855 = vmatpush2.msra.mxu0 %v758
    %1856 = vmatprep.subr.mxu0 0.0
    %1857 = vmatpush2.msra.mxu0 %v753
    %1858 = vmatprep.subr.mxu0 0.0
    %1859 = vmatpush2.msra.mxu0 %v748
    %1860 = vmatprep.subr.mxu0 0.0
    %1861 = vmatpush2.msra.mxu0 %v743
    %1862 = vmatprep.subr.mxu0 0.0
    %1863 = vmatpush2.msra.mxu0 %v738
    %1864 = vmatprep.subr.mxu0 0.0
    %1865 = vmatpush2.msra.mxu0 %v733
    %1866 = vmatprep.subr.mxu0 0.0
    %1867 = vmatpush2.msra.mxu0 %v728
    %1868 = vmatprep.subr.mxu0 0.0
    %1869 = vmatpush2.msra.mxu0 %v723
    %1870 = vmatprep.subr.mxu0 0.0
    %1871 = vmatpush2.msra.mxu0 %v718
    %1872 = vmatprep.subr.mxu0 0.0
    %1873 = vmatpush2.msra.mxu0 %v713
    %1874 = vmatprep.subr.mxu0 0.0
    %1875 = vmatpush2.msra.mxu0 %v708
    %1876 = vmatprep.subr.mxu0 0.0
    %1877 = vmatpush2.msra.mxu0 %v703
    %1878 = vmatprep.subr.mxu0 0.0
    %1879 = vmatpush2.msra.mxu0 %v698
    %1880 = vmatprep.subr.mxu0 0.0
    %1881 = vmatpush2.msra.mxu0 %v693
    %1882 = vmatprep.subr.mxu0 0.0
    %1883 = vmatpush2.msra.mxu0 %v688
    %1884 = vmatprep.subr.mxu0 0.0
    %1885 = vmatpush2.msra.mxu0 %v683
    %1886 = vmatprep.mubr.f32.mxu0 %v1006
    %1887 = vmatmul.mubr.f32.gmra.mxu0 %v1005
    %v1888 = vpop.f32.mrf.mxu0
    %v1889 = vadd.f32 %v1644, %v1888
    %v1890 = vpop.f32.mrf.mxu0
    %1891 = vmatprep.mubr.f32.mxu0 %v1015
    %1892 = vmatmul.mubr.f32.gmra.mxu0 %v1014
    %v1893 = vpop.f32.mrf.mxu0
    %v1894 = vadd.f32 %v1649, %v1893
    %v1895 = vpop.f32.mrf.mxu0
    %1896 = vmatprep.mubr.f32.mxu0 %v1024
    %1897 = vmatmul.mubr.f32.gmra.mxu0 %v1023
    %v1898 = vpop.f32.mrf.mxu0
    %v1899 = vadd.f32 %v1654, %v1898
    %v1900 = vpop.f32.mrf.mxu0
    %1901 = vmatprep.mubr.f32.mxu0 %v1033
    %1902 = vmatmul.mubr.f32.gmra.mxu0 %v1032
    %v1903 = vpop.f32.mrf.mxu0
    %v1904 = vadd.f32 %v1659, %v1903
    %v1905 = vpop.f32.mrf.mxu0
    %1906 = vmatprep.mubr.f32.mxu0 %v1042
    %1907 = vmatmul.mubr.f32.gmra.mxu0 %v1041
    %v1908 = vpop.f32.mrf.mxu0
    %v1909 = vadd.f32 %v1664, %v1908
    %v1910 = vpop.f32.mrf.mxu0
    %1911 = vmatprep.mubr.f32.mxu0 %v1051
    %1912 = vmatmul.mubr.f32.gmra.mxu0 %v1050
    %v1913 = vpop.f32.mrf.mxu0
    %v1914 = vadd.f32 %v1669, %v1913
    %v1915 = vpop.f32.mrf.mxu0
    %1916 = vmatprep.mubr.f32.mxu0 %v1060
    %1917 = vmatmul.mubr.f32.gmra.mxu0 %v1059
    %v1918 = vpop.f32.mrf.mxu0
    %v1919 = vadd.f32 %v1674, %v1918
    %v1920 = vpop.f32.mrf.mxu0
    %1921 = vmatprep.mubr.f32.mxu0 %v1069
    %1922 = vmatmul.mubr.f32.gmra.mxu0 %v1068
    %v1923 = vpop.f32.mrf.mxu0
    %v1924 = vadd.f32 %v1679, %v1923
    %v1925 = vpop.f32.mrf.mxu0
    %1926 = vmatprep.mubr.f32.mxu0 %v1078
    %1927 = vmatmul.mubr.f32.gmra.mxu0 %v1077
    %v1928 = vpop.f32.mrf.mxu0
    %v1929 = vadd.f32 %v1684, %v1928
    %v1930 = vpop.f32.mrf.mxu0
    %1931 = vmatprep.mubr.f32.mxu0 %v1087
    %1932 = vmatmul.mubr.f32.gmra.mxu0 %v1086
    %v1933 = vpop.f32.mrf.mxu0
    %v1934 = vadd.f32 %v1689, %v1933
    %v1935 = vpop.f32.mrf.mxu0
    %1936 = vmatprep.mubr.f32.mxu0 %v1096
    %1937 = vmatmul.mubr.f32.gmra.mxu0 %v1095
    %v1938 = vpop.f32.mrf.mxu0
    %v1939 = vadd.f32 %v1694, %v1938
    %v1940 = vpop.f32.mrf.mxu0
    %1941 = vmatprep.mubr.f32.mxu0 %v1105
    %1942 = vmatmul.mubr.f32.gmra.mxu0 %v1104
    %v1943 = vpop.f32.mrf.mxu0
    %v1944 = vadd.f32 %v1699, %v1943
    %v1945 = vpop.f32.mrf.mxu0
    %1946 = vmatprep.mubr.f32.mxu0 %v1114
    %1947 = vmatmul.mubr.f32.gmra.mxu0 %v1113
    %v1948 = vpop.f32.mrf.mxu0
    %v1949 = vadd.f32 %v1704, %v1948
    %v1950 = vpop.f32.mrf.mxu0
    %1951 = vmatprep.mubr.f32.mxu0 %v1123
    %1952 = vmatmul.mubr.f32.gmra.mxu0 %v1122
    %v1953 = vpop.f32.mrf.mxu0
    %v1954 = vadd.f32 %v1709, %v1953
    %v1955 = vpop.f32.mrf.mxu0
    %1956 = vmatprep.mubr.f32.mxu0 %v1132
    %1957 = vmatmul.mubr.f32.gmra.mxu0 %v1131
    %v1958 = vpop.f32.mrf.mxu0
    %v1959 = vadd.f32 %v1714, %v1958
    %v1960 = vpop.f32.mrf.mxu0
    %1961 = vmatprep.mubr.f32.mxu0 %v1141
    %1962 = vmatmul.mubr.f32.gmra.mxu0 %v1140
    %v1963 = vpop.f32.mrf.mxu0
    %v1964 = vadd.f32 %v1719, %v1963
    %v1965 = vpop.f32.mrf.mxu0
    %1966 = vmatprep.mubr.f32.mxu0 %v1150
    %1967 = vmatmul.mubr.f32.gmra.mxu0 %v1149
    %v1968 = vpop.f32.mrf.mxu0
    %v1969 = vadd.f32 %v1724, %v1968
    %v1970 = vpop.f32.mrf.mxu0
    %1971 = vmatprep.mubr.f32.mxu0 %v1159
    %1972 = vmatmul.mubr.f32.gmra.mxu0 %v1158
    %v1973 = vpop.f32.mrf.mxu0
    %v1974 = vadd.f32 %v1729, %v1973
    %v1975 = vpop.f32.mrf.mxu0
    %1976 = vmatprep.mubr.f32.mxu0 %v1168
    %1977 = vmatmul.mubr.f32.gmra.mxu0 %v1167
    %v1978 = vpop.f32.mrf.mxu0
    %v1979 = vadd.f32 %v1734, %v1978
    %v1980 = vpop.f32.mrf.mxu0
    %1981 = vmatprep.mubr.f32.mxu0 %v1177
    %1982 = vmatmul.mubr.f32.gmra.mxu0 %v1176
    %v1983 = vpop.f32.mrf.mxu0
    %v1984 = vadd.f32 %v1739, %v1983
    %v1985 = vpop.f32.mrf.mxu0
    %1986 = vmatprep.mubr.f32.mxu0 %v1186
    %1987 = vmatmul.mubr.f32.gmra.mxu0 %v1185
    %v1988 = vpop.f32.mrf.mxu0
    %v1989 = vadd.f32 %v1744, %v1988
    %v1990 = vpop.f32.mrf.mxu0
    %1991 = vmatprep.mubr.f32.mxu0 %v1195
    %1992 = vmatmul.mubr.f32.gmra.mxu0 %v1194
    %v1993 = vpop.f32.mrf.mxu0
    %v1994 = vadd.f32 %v1749, %v1993
    %v1995 = vpop.f32.mrf.mxu0
    %1996 = vmatprep.mubr.f32.mxu0 %v1204
    %1997 = vmatmul.mubr.f32.gmra.mxu0 %v1203
    %v1998 = vpop.f32.mrf.mxu0
    %v1999 = vadd.f32 %v1754, %v1998
    %v2000 = vpop.f32.mrf.mxu0
    %2001 = vmatprep.mubr.f32.mxu0 %v1213
    %2002 = vmatmul.mubr.f32.gmra.mxu0 %v1212
    %v2003 = vpop.f32.mrf.mxu0
    %v2004 = vadd.f32 %v1759, %v2003
    %v2005 = vpop.f32.mrf.mxu0
    %2006 = vmatprep.mubr.f32.mxu0 %v1222
    %2007 = vmatmul.mubr.f32.gmra.mxu0 %v1221
    %v2008 = vpop.f32.mrf.mxu0
    %v2009 = vadd.f32 %v1764, %v2008
    %v2010 = vpop.f32.mrf.mxu0
    %2011 = vmatprep.mubr.f32.mxu0 %v1231
    %2012 = vmatmul.mubr.f32.gmra.mxu0 %v1230
    %v2013 = vpop.f32.mrf.mxu0
    %v2014 = vadd.f32 %v1769, %v2013
    %v2015 = vpop.f32.mrf.mxu0
    %2016 = vmatprep.mubr.f32.mxu0 %v1240
    %2017 = vmatmul.mubr.f32.gmra.mxu0 %v1239
    %v2018 = vpop.f32.mrf.mxu0
    %v2019 = vadd.f32 %v1774, %v2018
    %v2020 = vpop.f32.mrf.mxu0
    %2021 = vmatprep.mubr.f32.mxu0 %v1249
    %2022 = vmatmul.mubr.f32.gmra.mxu0 %v1248
    %v2023 = vpop.f32.mrf.mxu0
    %v2024 = vadd.f32 %v1779, %v2023
    %v2025 = vpop.f32.mrf.mxu0
    %2026 = vmatprep.mubr.f32.mxu0 %v1258
    %2027 = vmatmul.mubr.f32.gmra.mxu0 %v1257
    %v2028 = vpop.f32.mrf.mxu0
    %v2029 = vadd.f32 %v1784, %v2028
    %v2030 = vpop.f32.mrf.mxu0
    %2031 = vmatprep.mubr.f32.mxu0 %v1267
    %2032 = vmatmul.mubr.f32.gmra.mxu0 %v1266
    %v2033 = vpop.f32.mrf.mxu0
    %v2034 = vadd.f32 %v1789, %v2033
    %v2035 = vpop.f32.mrf.mxu0
    %2036 = vmatprep.mubr.f32.mxu0 %v1276
    %2037 = vmatmul.mubr.f32.gmra.mxu0 %v1275
    %v2038 = vpop.f32.mrf.mxu0
    %v2039 = vadd.f32 %v1794, %v2038
    %v2040 = vpop.f32.mrf.mxu0
    %2041 = vmatprep.mubr.f32.mxu0 %v1285
    %2042 = vmatmul.mubr.f32.gmra.mxu0 %v1284
    %v2043 = vpop.f32.mrf.mxu0
    %v2044 = vadd.f32 %v1799, %v2043
    %v2045 = vpop.f32.mrf.mxu0
    %2046 = vmatprep.mubr.f32.mxu0 %v1294
    %2047 = vmatmul.mubr.f32.gmra.mxu0 %v1293
    %v2048 = vpop.f32.mrf.mxu0
    %v2049 = vadd.f32 %v1804, %v2048
    %v2050 = vpop.f32.mrf.mxu0
    %2051 = vmatprep.mubr.f32.mxu0 %v1303
    %2052 = vmatmul.mubr.f32.gmra.mxu0 %v1302
    %v2053 = vpop.f32.mrf.mxu0
    %v2054 = vadd.f32 %v1809, %v2053
    %v2055 = vpop.f32.mrf.mxu0
    %2056 = vmatprep.mubr.f32.mxu0 %v1312
    %2057 = vmatmul.mubr.f32.gmra.mxu0 %v1311
    %v2058 = vpop.f32.mrf.mxu0
    %v2059 = vadd.f32 %v1814, %v2058
    %v2060 = vpop.f32.mrf.mxu0
    %2061 = vmatprep.mubr.f32.mxu0 %v1321
    %2062 = vmatmul.mubr.f32.gmra.mxu0 %v1320
    %v2063 = vpop.f32.mrf.mxu0
    %v2064 = vadd.f32 %v1819, %v2063
    %v2065 = vpop.f32.mrf.mxu0
    %2066 = vdwg.mxu0
    %2067 = vmatprep.subr.mxu0 0.0
    %2068 = vmatpush1.msra.mxu0 %v838
    %2069 = vmatprep.subr.mxu0 0.0
    %2070 = vmatpush1.msra.mxu0 %v833
    %2071 = vmatprep.subr.mxu0 0.0
    %2072 = vmatpush1.msra.mxu0 %v828
    %2073 = vmatprep.subr.mxu0 0.0
    %2074 = vmatpush1.msra.mxu0 %v823
    %2075 = vmatprep.subr.mxu0 0.0
    %2076 = vmatpush1.msra.mxu0 %v818
    %2077 = vmatprep.subr.mxu0 0.0
    %2078 = vmatpush1.msra.mxu0 %v813
    %2079 = vmatprep.subr.mxu0 0.0
    %2080 = vmatpush1.msra.mxu0 %v808
    %2081 = vmatprep.subr.mxu0 0.0
    %2082 = vmatpush1.msra.mxu0 %v803
    %2083 = vmatprep.subr.mxu0 0.0
    %2084 = vmatpush1.msra.mxu0 %v798
    %2085 = vmatprep.subr.mxu0 0.0
    %2086 = vmatpush1.msra.mxu0 %v793
    %2087 = vmatprep.subr.mxu0 0.0
    %2088 = vmatpush1.msra.mxu0 %v788
    %2089 = vmatprep.subr.mxu0 0.0
    %2090 = vmatpush1.msra.mxu0 %v783
    %2091 = vmatprep.subr.mxu0 0.0
    %2092 = vmatpush1.msra.mxu0 %v778
    %2093 = vmatprep.subr.mxu0 0.0
    %2094 = vmatpush1.msra.mxu0 %v773
    %2095 = vmatprep.subr.mxu0 0.0
    %2096 = vmatpush1.msra.mxu0 %v768
    %2097 = vmatprep.subr.mxu0 0.0
    %2098 = vmatpush1.msra.mxu0 %v763
    %2099 = vmatprep.subr.mxu0 0.0
    %2100 = vmatpush2.msra.mxu0 %v918
    %2101 = vmatprep.subr.mxu0 0.0
    %2102 = vmatpush2.msra.mxu0 %v913
    %2103 = vmatprep.subr.mxu0 0.0
    %2104 = vmatpush2.msra.mxu0 %v908
    %2105 = vmatprep.subr.mxu0 0.0
    %2106 = vmatpush2.msra.mxu0 %v903
    %2107 = vmatprep.subr.mxu0 0.0
    %2108 = vmatpush2.msra.mxu0 %v898
    %2109 = vmatprep.subr.mxu0 0.0
    %2110 = vmatpush2.msra.mxu0 %v893
    %2111 = vmatprep.subr.mxu0 0.0
    %2112 = vmatpush2.msra.mxu0 %v888
    %2113 = vmatprep.subr.mxu0 0.0
    %2114 = vmatpush2.msra.mxu0 %v883
    %2115 = vmatprep.subr.mxu0 0.0
    %2116 = vmatpush2.msra.mxu0 %v878
    %2117 = vmatprep.subr.mxu0 0.0
    %2118 = vmatpush2.msra.mxu0 %v873
    %2119 = vmatprep.subr.mxu0 0.0
    %2120 = vmatpush2.msra.mxu0 %v868
    %2121 = vmatprep.subr.mxu0 0.0
    %2122 = vmatpush2.msra.mxu0 %v863
    %2123 = vmatprep.subr.mxu0 0.0
    %2124 = vmatpush2.msra.mxu0 %v858
    %2125 = vmatprep.subr.mxu0 0.0
    %2126 = vmatpush2.msra.mxu0 %v853
    %2127 = vmatprep.subr.mxu0 0.0
    %2128 = vmatpush2.msra.mxu0 %v848
    %2129 = vmatprep.subr.mxu0 0.0
    %2130 = vmatpush2.msra.mxu0 %v843
    %2131 = vmatprep.mubr.f32.mxu0 %v1008
    %2132 = vmatmul.mubr.f32.gmra.mxu0 %v1007
    %v2133 = vpop.f32.mrf.mxu0
    %v2134 = vadd.f32 %v1889, %v2133
    %v2135 = vpop.f32.mrf.mxu0
    %2136 = vmatprep.mubr.f32.mxu0 %v1017
    %2137 = vmatmul.mubr.f32.gmra.mxu0 %v1016
    %v2138 = vpop.f32.mrf.mxu0
    %v2139 = vadd.f32 %v1894, %v2138
    %v2140 = vpop.f32.mrf.mxu0
    %2141 = vmatprep.mubr.f32.mxu0 %v1026
    %2142 = vmatmul.mubr.f32.gmra.mxu0 %v1025
    %v2143 = vpop.f32.mrf.mxu0
    %v2144 = vadd.f32 %v1899, %v2143
    %v2145 = vpop.f32.mrf.mxu0
    %2146 = vmatprep.mubr.f32.mxu0 %v1035
    %2147 = vmatmul.mubr.f32.gmra.mxu0 %v1034
    %v2148 = vpop.f32.mrf.mxu0
    %v2149 = vadd.f32 %v1904, %v2148
    %v2150 = vpop.f32.mrf.mxu0
    %2151 = vmatprep.mubr.f32.mxu0 %v1044
    %2152 = vmatmul.mubr.f32.gmra.mxu0 %v1043
    %v2153 = vpop.f32.mrf.mxu0
    %v2154 = vadd.f32 %v1909, %v2153
    %v2155 = vpop.f32.mrf.mxu0
    %2156 = vmatprep.mubr.f32.mxu0 %v1053
    %2157 = vmatmul.mubr.f32.gmra.mxu0 %v1052
    %v2158 = vpop.f32.mrf.mxu0
    %v2159 = vadd.f32 %v1914, %v2158
    %v2160 = vpop.f32.mrf.mxu0
    %2161 = vmatprep.mubr.f32.mxu0 %v1062
    %2162 = vmatmul.mubr.f32.gmra.mxu0 %v1061
    %v2163 = vpop.f32.mrf.mxu0
    %v2164 = vadd.f32 %v1919, %v2163
    %v2165 = vpop.f32.mrf.mxu0
    %2166 = vmatprep.mubr.f32.mxu0 %v1071
    %2167 = vmatmul.mubr.f32.gmra.mxu0 %v1070
    %v2168 = vpop.f32.mrf.mxu0
    %v2169 = vadd.f32 %v1924, %v2168
    %v2170 = vpop.f32.mrf.mxu0
    %2171 = vmatprep.mubr.f32.mxu0 %v1080
    %2172 = vmatmul.mubr.f32.gmra.mxu0 %v1079
    %v2173 = vpop.f32.mrf.mxu0
    %v2174 = vadd.f32 %v1929, %v2173
    %v2175 = vpop.f32.mrf.mxu0
    %2176 = vmatprep.mubr.f32.mxu0 %v1089
    %2177 = vmatmul.mubr.f32.gmra.mxu0 %v1088
    %v2178 = vpop.f32.mrf.mxu0
    %v2179 = vadd.f32 %v1934, %v2178
    %v2180 = vpop.f32.mrf.mxu0
    %2181 = vmatprep.mubr.f32.mxu0 %v1098
    %2182 = vmatmul.mubr.f32.gmra.mxu0 %v1097
    %v2183 = vpop.f32.mrf.mxu0
    %v2184 = vadd.f32 %v1939, %v2183
    %v2185 = vpop.f32.mrf.mxu0
    %2186 = vmatprep.mubr.f32.mxu0 %v1107
    %2187 = vmatmul.mubr.f32.gmra.mxu0 %v1106
    %v2188 = vpop.f32.mrf.mxu0
    %v2189 = vadd.f32 %v1944, %v2188
    %v2190 = vpop.f32.mrf.mxu0
    %2191 = vmatprep.mubr.f32.mxu0 %v1116
    %2192 = vmatmul.mubr.f32.gmra.mxu0 %v1115
    %v2193 = vpop.f32.mrf.mxu0
    %v2194 = vadd.f32 %v1949, %v2193
    %v2195 = vpop.f32.mrf.mxu0
    %2196 = vmatprep.mubr.f32.mxu0 %v1125
    %2197 = vmatmul.mubr.f32.gmra.mxu0 %v1124
    %v2198 = vpop.f32.mrf.mxu0
    %v2199 = vadd.f32 %v1954, %v2198
    %v2200 = vpop.f32.mrf.mxu0
    %2201 = vmatprep.mubr.f32.mxu0 %v1134
    %2202 = vmatmul.mubr.f32.gmra.mxu0 %v1133
    %v2203 = vpop.f32.mrf.mxu0
    %v2204 = vadd.f32 %v1959, %v2203
    %v2205 = vpop.f32.mrf.mxu0
    %2206 = vmatprep.mubr.f32.mxu0 %v1143
    %2207 = vmatmul.mubr.f32.gmra.mxu0 %v1142
    %v2208 = vpop.f32.mrf.mxu0
    %v2209 = vadd.f32 %v1964, %v2208
    %v2210 = vpop.f32.mrf.mxu0
    %2211 = vmatprep.mubr.f32.mxu0 %v1152
    %2212 = vmatmul.mubr.f32.gmra.mxu0 %v1151
    %v2213 = vpop.f32.mrf.mxu0
    %v2214 = vadd.f32 %v1969, %v2213
    %v2215 = vpop.f32.mrf.mxu0
    %2216 = vmatprep.mubr.f32.mxu0 %v1161
    %2217 = vmatmul.mubr.f32.gmra.mxu0 %v1160
    %v2218 = vpop.f32.mrf.mxu0
    %v2219 = vadd.f32 %v1974, %v2218
    %v2220 = vpop.f32.mrf.mxu0
    %2221 = vmatprep.mubr.f32.mxu0 %v1170
    %2222 = vmatmul.mubr.f32.gmra.mxu0 %v1169
    %v2223 = vpop.f32.mrf.mxu0
    %v2224 = vadd.f32 %v1979, %v2223
    %v2225 = vpop.f32.mrf.mxu0
    %2226 = vmatprep.mubr.f32.mxu0 %v1179
    %2227 = vmatmul.mubr.f32.gmra.mxu0 %v1178
    %v2228 = vpop.f32.mrf.mxu0
    %v2229 = vadd.f32 %v1984, %v2228
    %v2230 = vpop.f32.mrf.mxu0
    %2231 = vmatprep.mubr.f32.mxu0 %v1188
    %2232 = vmatmul.mubr.f32.gmra.mxu0 %v1187
    %v2233 = vpop.f32.mrf.mxu0
    %v2234 = vadd.f32 %v1989, %v2233
    %v2235 = vpop.f32.mrf.mxu0
    %2236 = vmatprep.mubr.f32.mxu0 %v1197
    %2237 = vmatmul.mubr.f32.gmra.mxu0 %v1196
    %v2238 = vpop.f32.mrf.mxu0
    %v2239 = vadd.f32 %v1994, %v2238
    %v2240 = vpop.f32.mrf.mxu0
    %2241 = vmatprep.mubr.f32.mxu0 %v1206
    %2242 = vmatmul.mubr.f32.gmra.mxu0 %v1205
    %v2243 = vpop.f32.mrf.mxu0
    %v2244 = vadd.f32 %v1999, %v2243
    %v2245 = vpop.f32.mrf.mxu0
    %2246 = vmatprep.mubr.f32.mxu0 %v1215
    %2247 = vmatmul.mubr.f32.gmra.mxu0 %v1214
    %v2248 = vpop.f32.mrf.mxu0
    %v2249 = vadd.f32 %v2004, %v2248
    %v2250 = vpop.f32.mrf.mxu0
    %2251 = vmatprep.mubr.f32.mxu0 %v1224
    %2252 = vmatmul.mubr.f32.gmra.mxu0 %v1223
    %v2253 = vpop.f32.mrf.mxu0
    %v2254 = vadd.f32 %v2009, %v2253
    %v2255 = vpop.f32.mrf.mxu0
    %2256 = vmatprep.mubr.f32.mxu0 %v1233
    %2257 = vmatmul.mubr.f32.gmra.mxu0 %v1232
    %v2258 = vpop.f32.mrf.mxu0
    %v2259 = vadd.f32 %v2014, %v2258
    %v2260 = vpop.f32.mrf.mxu0
    %2261 = vmatprep.mubr.f32.mxu0 %v1242
    %2262 = vmatmul.mubr.f32.gmra.mxu0 %v1241
    %v2263 = vpop.f32.mrf.mxu0
    %v2264 = vadd.f32 %v2019, %v2263
    %v2265 = vpop.f32.mrf.mxu0
    %2266 = vmatprep.mubr.f32.mxu0 %v1251
    %2267 = vmatmul.mubr.f32.gmra.mxu0 %v1250
    %v2268 = vpop.f32.mrf.mxu0
    %v2269 = vadd.f32 %v2024, %v2268
    %v2270 = vpop.f32.mrf.mxu0
    %2271 = vmatprep.mubr.f32.mxu0 %v1260
    %2272 = vmatmul.mubr.f32.gmra.mxu0 %v1259
    %v2273 = vpop.f32.mrf.mxu0
    %v2274 = vadd.f32 %v2029, %v2273
    %v2275 = vpop.f32.mrf.mxu0
    %2276 = vmatprep.mubr.f32.mxu0 %v1269
    %2277 = vmatmul.mubr.f32.gmra.mxu0 %v1268
    %v2278 = vpop.f32.mrf.mxu0
    %v2279 = vadd.f32 %v2034, %v2278
    %v2280 = vpop.f32.mrf.mxu0
    %2281 = vmatprep.mubr.f32.mxu0 %v1278
    %2282 = vmatmul.mubr.f32.gmra.mxu0 %v1277
    %v2283 = vpop.f32.mrf.mxu0
    %v2284 = vadd.f32 %v2039, %v2283
    %v2285 = vpop.f32.mrf.mxu0
    %2286 = vmatprep.mubr.f32.mxu0 %v1287
    %2287 = vmatmul.mubr.f32.gmra.mxu0 %v1286
    %v2288 = vpop.f32.mrf.mxu0
    %v2289 = vadd.f32 %v2044, %v2288
    %v2290 = vpop.f32.mrf.mxu0
    %2291 = vmatprep.mubr.f32.mxu0 %v1296
    %2292 = vmatmul.mubr.f32.gmra.mxu0 %v1295
    %v2293 = vpop.f32.mrf.mxu0
    %v2294 = vadd.f32 %v2049, %v2293
    %v2295 = vpop.f32.mrf.mxu0
    %2296 = vmatprep.mubr.f32.mxu0 %v1305
    %2297 = vmatmul.mubr.f32.gmra.mxu0 %v1304
    %v2298 = vpop.f32.mrf.mxu0
    %v2299 = vadd.f32 %v2054, %v2298
    %v2300 = vpop.f32.mrf.mxu0
    %2301 = vmatprep.mubr.f32.mxu0 %v1314
    %2302 = vmatmul.mubr.f32.gmra.mxu0 %v1313
    %v2303 = vpop.f32.mrf.mxu0
    %v2304 = vadd.f32 %v2059, %v2303
    %v2305 = vpop.f32.mrf.mxu0
    %2306 = vmatprep.mubr.f32.mxu0 %v1323
    %2307 = vmatmul.mubr.f32.gmra.mxu0 %v1322
    %v2308 = vpop.f32.mrf.mxu0
    %v2309 = vadd.f32 %v2064, %v2308
    %v2310 = vpop.f32.mrf.mxu0
    %2311 = vdwg.mxu0
    %2312 = vmatprep.subr.mxu0 0.0
    %2313 = vmatpush1.msra.mxu0 %v998
    %2314 = vmatprep.subr.mxu0 0.0
    %2315 = vmatpush1.msra.mxu0 %v993
    %2316 = vmatprep.subr.mxu0 0.0
    %2317 = vmatpush1.msra.mxu0 %v988
    %2318 = vmatprep.subr.mxu0 0.0
    %2319 = vmatpush1.msra.mxu0 %v983
    %2320 = vmatprep.subr.mxu0 0.0
    %2321 = vmatpush1.msra.mxu0 %v978
    %2322 = vmatprep.subr.mxu0 0.0
    %2323 = vmatpush1.msra.mxu0 %v973
    %2324 = vmatprep.subr.mxu0 0.0
    %2325 = vmatpush1.msra.mxu0 %v968
    %2326 = vmatprep.subr.mxu0 0.0
    %2327 = vmatpush1.msra.mxu0 %v963
    %2328 = vmatprep.subr.mxu0 0.0
    %2329 = vmatpush1.msra.mxu0 %v958
    %2330 = vmatprep.subr.mxu0 0.0
    %2331 = vmatpush1.msra.mxu0 %v953
    %2332 = vmatprep.subr.mxu0 0.0
    %2333 = vmatpush1.msra.mxu0 %v948
    %2334 = vmatprep.subr.mxu0 0.0
    %2335 = vmatpush1.msra.mxu0 %v943
    %2336 = vmatprep.subr.mxu0 0.0
    %2337 = vmatpush1.msra.mxu0 %v938
    %2338 = vmatprep.subr.mxu0 0.0
    %2339 = vmatpush1.msra.mxu0 %v933
    %2340 = vmatprep.subr.mxu0 0.0
    %2341 = vmatpush1.msra.mxu0 %v928
    %2342 = vmatprep.subr.mxu0 0.0
    %2343 = vmatpush1.msra.mxu0 %v923
    %2344 = vmatprep.subr.mxu0 0.0
    %2345 = vmatpush2.msra.mxu0 0.0
    %2346 = vmatprep.subr.mxu0 0.0
    %2347 = vmatpush2.msra.mxu0 0.0
    %2348 = vmatprep.subr.mxu0 0.0
    %2349 = vmatpush2.msra.mxu0 0.0
    %2350 = vmatprep.subr.mxu0 0.0
    %2351 = vmatpush2.msra.mxu0 0.0
    %2352 = vmatprep.subr.mxu0 0.0
    %2353 = vmatpush2.msra.mxu0 0.0
    %2354 = vmatprep.subr.mxu0 0.0
    %2355 = vmatpush2.msra.mxu0 0.0
    %2356 = vmatprep.subr.mxu0 0.0
    %2357 = vmatpush2.msra.mxu0 0.0
    %2358 = vmatprep.subr.mxu0 0.0
    %2359 = vmatpush2.msra.mxu0 0.0
    %2360 = vmatprep.subr.mxu0 0.0
    %2361 = vmatpush2.msra.mxu0 0.0
    %2362 = vmatprep.subr.mxu0 0.0
    %2363 = vmatpush2.msra.mxu0 0.0
    %2364 = vmatprep.subr.mxu0 0.0
    %2365 = vmatpush2.msra.mxu0 0.0
    %2366 = vmatprep.subr.mxu0 0.0
    %2367 = vmatpush2.msra.mxu0 0.0
    %2368 = vmatprep.subr.mxu0 0.0
    %2369 = vmatpush2.msra.mxu0 0.0
    %2370 = vmatprep.subr.mxu0 0.0
    %2371 = vmatpush2.msra.mxu0 0.0
    %2372 = vmatprep.subr.mxu0 0.0
    %2373 = vmatpush2.msra.mxu0 0.0
    %2374 = vmatprep.subr.mxu0 0.0
    %2375 = vmatpush2.msra.mxu0 0.0
    %2376 = vmatprep.mubr.f32.mxu0 0.0
    %2377 = vmatmul.mubr.f32.gmra.mxu0 %v1009
    %v2378 = vpop.f32.mrf.mxu0
    %v2379 = vadd.f32 %v2134, %v2378
    %v2380 = vpop.f32.mrf.mxu0
    %2381 = vmatprep.mubr.f32.mxu0 0.0
    %2382 = vmatmul.mubr.f32.gmra.mxu0 %v1018
    %v2383 = vpop.f32.mrf.mxu0
    %v2384 = vadd.f32 %v2139, %v2383
    %v2385 = vpop.f32.mrf.mxu0
    %2386 = vmatprep.mubr.f32.mxu0 0.0
    %2387 = vmatmul.mubr.f32.gmra.mxu0 %v1027
    %v2388 = vpop.f32.mrf.mxu0
    %v2389 = vadd.f32 %v2144, %v2388
    %v2390 = vpop.f32.mrf.mxu0
    %2391 = vmatprep.mubr.f32.mxu0 0.0
    %2392 = vmatmul.mubr.f32.gmra.mxu0 %v1036
    %v2393 = vpop.f32.mrf.mxu0
    %v2394 = vadd.f32 %v2149, %v2393
    %v2395 = vpop.f32.mrf.mxu0
    %2396 = vmatprep.mubr.f32.mxu0 0.0
    %2397 = vmatmul.mubr.f32.gmra.mxu0 %v1045
    %v2398 = vpop.f32.mrf.mxu0
    %v2399 = vadd.f32 %v2154, %v2398
    %v2400 = vpop.f32.mrf.mxu0
    %2401 = vmatprep.mubr.f32.mxu0 0.0
    %2402 = vmatmul.mubr.f32.gmra.mxu0 %v1054
    %v2403 = vpop.f32.mrf.mxu0
    %v2404 = vadd.f32 %v2159, %v2403
    %v2405 = vpop.f32.mrf.mxu0
    %2406 = vmatprep.mubr.f32.mxu0 0.0
    %2407 = vmatmul.mubr.f32.gmra.mxu0 %v1063
    %v2408 = vpop.f32.mrf.mxu0
    %v2409 = vadd.f32 %v2164, %v2408
    %v2410 = vpop.f32.mrf.mxu0
    %2411 = vmatprep.mubr.f32.mxu0 0.0
    %2412 = vmatmul.mubr.f32.gmra.mxu0 %v1072
    %v2413 = vpop.f32.mrf.mxu0
    %v2414 = vadd.f32 %v2169, %v2413
    %v2415 = vpop.f32.mrf.mxu0
    %2416 = vmatprep.mubr.f32.mxu0 0.0
    %2417 = vmatmul.mubr.f32.gmra.mxu0 %v1081
    %v2418 = vpop.f32.mrf.mxu0
    %v2419 = vadd.f32 %v2174, %v2418
    %v2420 = vpop.f32.mrf.mxu0
    %2421 = vmatprep.mubr.f32.mxu0 0.0
    %2422 = vmatmul.mubr.f32.gmra.mxu0 %v1090
    %v2423 = vpop.f32.mrf.mxu0
    %v2424 = vadd.f32 %v2179, %v2423
    %v2425 = vpop.f32.mrf.mxu0
    %2426 = vmatprep.mubr.f32.mxu0 0.0
    %2427 = vmatmul.mubr.f32.gmra.mxu0 %v1099
    %v2428 = vpop.f32.mrf.mxu0
    %v2429 = vadd.f32 %v2184, %v2428
    %v2430 = vpop.f32.mrf.mxu0
    %2431 = vmatprep.mubr.f32.mxu0 0.0
    %2432 = vmatmul.mubr.f32.gmra.mxu0 %v1108
    %v2433 = vpop.f32.mrf.mxu0
    %v2434 = vadd.f32 %v2189, %v2433
    %v2435 = vpop.f32.mrf.mxu0
    %2436 = vmatprep.mubr.f32.mxu0 0.0
    %2437 = vmatmul.mubr.f32.gmra.mxu0 %v1117
    %v2438 = vpop.f32.mrf.mxu0
    %v2439 = vadd.f32 %v2194, %v2438
    %v2440 = vpop.f32.mrf.mxu0
    %2441 = vmatprep.mubr.f32.mxu0 0.0
    %2442 = vmatmul.mubr.f32.gmra.mxu0 %v1126
    %v2443 = vpop.f32.mrf.mxu0
    %v2444 = vadd.f32 %v2199, %v2443
    %v2445 = vpop.f32.mrf.mxu0
    %2446 = vmatprep.mubr.f32.mxu0 0.0
    %2447 = vmatmul.mubr.f32.gmra.mxu0 %v1135
    %v2448 = vpop.f32.mrf.mxu0
    %v2449 = vadd.f32 %v2204, %v2448
    %v2450 = vpop.f32.mrf.mxu0
    %2451 = vmatprep.mubr.f32.mxu0 0.0
    %2452 = vmatmul.mubr.f32.gmra.mxu0 %v1144
    %v2453 = vpop.f32.mrf.mxu0
    %v2454 = vadd.f32 %v2209, %v2453
    %v2455 = vpop.f32.mrf.mxu0
    %2456 = vmatprep.mubr.f32.mxu0 0.0
    %2457 = vmatmul.mubr.f32.gmra.mxu0 %v1153
    %v2458 = vpop.f32.mrf.mxu0
    %v2459 = vadd.f32 %v2214, %v2458
    %v2460 = vpop.f32.mrf.mxu0
    %2461 = vmatprep.mubr.f32.mxu0 0.0
    %2462 = vmatmul.mubr.f32.gmra.mxu0 %v1162
    %v2463 = vpop.f32.mrf.mxu0
    %v2464 = vadd.f32 %v2219, %v2463
    %v2465 = vpop.f32.mrf.mxu0
    %2466 = vmatprep.mubr.f32.mxu0 0.0
    %2467 = vmatmul.mubr.f32.gmra.mxu0 %v1171
    %v2468 = vpop.f32.mrf.mxu0
    %v2469 = vadd.f32 %v2224, %v2468
    %v2470 = vpop.f32.mrf.mxu0
    %2471 = vmatprep.mubr.f32.mxu0 0.0
    %2472 = vmatmul.mubr.f32.gmra.mxu0 %v1180
    %v2473 = vpop.f32.mrf.mxu0
    %v2474 = vadd.f32 %v2229, %v2473
    %v2475 = vpop.f32.mrf.mxu0
    %2476 = vmatprep.mubr.f32.mxu0 0.0
    %2477 = vmatmul.mubr.f32.gmra.mxu0 %v1189
    %v2478 = vpop.f32.mrf.mxu0
    %v2479 = vadd.f32 %v2234, %v2478
    %v2480 = vpop.f32.mrf.mxu0
    %2481 = vmatprep.mubr.f32.mxu0 0.0
    %2482 = vmatmul.mubr.f32.gmra.mxu0 %v1198
    %v2483 = vpop.f32.mrf.mxu0
    %v2484 = vadd.f32 %v2239, %v2483
    %v2485 = vpop.f32.mrf.mxu0
    %2486 = vmatprep.mubr.f32.mxu0 0.0
    %2487 = vmatmul.mubr.f32.gmra.mxu0 %v1207
    %v2488 = vpop.f32.mrf.mxu0
    %v2489 = vadd.f32 %v2244, %v2488
    %v2490 = vpop.f32.mrf.mxu0
    %2491 = vmatprep.mubr.f32.mxu0 0.0
    %2492 = vmatmul.mubr.f32.gmra.mxu0 %v1216
    %v2493 = vpop.f32.mrf.mxu0
    %v2494 = vadd.f32 %v2249, %v2493
    %v2495 = vpop.f32.mrf.mxu0
    %2496 = vmatprep.mubr.f32.mxu0 0.0
    %2497 = vmatmul.mubr.f32.gmra.mxu0 %v1225
    %v2498 = vpop.f32.mrf.mxu0
    %v2499 = vadd.f32 %v2254, %v2498
    %v2500 = vpop.f32.mrf.mxu0
    %2501 = vmatprep.mubr.f32.mxu0 0.0
    %2502 = vmatmul.mubr.f32.gmra.mxu0 %v1234
    %v2503 = vpop.f32.mrf.mxu0
    %v2504 = vadd.f32 %v2259, %v2503
    %v2505 = vpop.f32.mrf.mxu0
    %2506 = vmatprep.mubr.f32.mxu0 0.0
    %2507 = vmatmul.mubr.f32.gmra.mxu0 %v1243
    %v2508 = vpop.f32.mrf.mxu0
    %v2509 = vadd.f32 %v2264, %v2508
    %v2510 = vpop.f32.mrf.mxu0
    %2511 = vmatprep.mubr.f32.mxu0 0.0
    %2512 = vmatmul.mubr.f32.gmra.mxu0 %v1252
    %v2513 = vpop.f32.mrf.mxu0
    %v2514 = vadd.f32 %v2269, %v2513
    %v2515 = vpop.f32.mrf.mxu0
    %2516 = vmatprep.mubr.f32.mxu0 0.0
    %2517 = vmatmul.mubr.f32.gmra.mxu0 %v1261
    %v2518 = vpop.f32.mrf.mxu0
    %v2519 = vadd.f32 %v2274, %v2518
    %v2520 = vpop.f32.mrf.mxu0
    %2521 = vmatprep.mubr.f32.mxu0 0.0
    %2522 = vmatmul.mubr.f32.gmra.mxu0 %v1270
    %v2523 = vpop.f32.mrf.mxu0
    %v2524 = vadd.f32 %v2279, %v2523
    %v2525 = vpop.f32.mrf.mxu0
    %2526 = vmatprep.mubr.f32.mxu0 0.0
    %2527 = vmatmul.mubr.f32.gmra.mxu0 %v1279
    %v2528 = vpop.f32.mrf.mxu0
    %v2529 = vadd.f32 %v2284, %v2528
    %v2530 = vpop.f32.mrf.mxu0
    %2531 = vmatprep.mubr.f32.mxu0 0.0
    %2532 = vmatmul.mubr.f32.gmra.mxu0 %v1288
    %v2533 = vpop.f32.mrf.mxu0
    %v2534 = vadd.f32 %v2289, %v2533
    %v2535 = vpop.f32.mrf.mxu0
    %2536 = vmatprep.mubr.f32.mxu0 0.0
    %2537 = vmatmul.mubr.f32.gmra.mxu0 %v1297
    %v2538 = vpop.f32.mrf.mxu0
    %v2539 = vadd.f32 %v2294, %v2538
    %v2540 = vpop.f32.mrf.mxu0
    %2541 = vmatprep.mubr.f32.mxu0 0.0
    %2542 = vmatmul.mubr.f32.gmra.mxu0 %v1306
    %v2543 = vpop.f32.mrf.mxu0
    %v2544 = vadd.f32 %v2299, %v2543
    %v2545 = vpop.f32.mrf.mxu0
    %2546 = vmatprep.mubr.f32.mxu0 0.0
    %2547 = vmatmul.mubr.f32.gmra.mxu0 %v1315
    %v2548 = vpop.f32.mrf.mxu0
    %v2549 = vadd.f32 %v2304, %v2548
    %v2550 = vpop.f32.mrf.mxu0
    %2551 = vmatprep.mubr.f32.mxu0 0.0
    %2552 = vmatmul.mubr.f32.gmra.mxu0 %v1324
    %v2553 = vpop.f32.mrf.mxu0
    %v2554 = vadd.f32 %v2309, %v2553
    %v2555 = vpop.f32.mrf.mxu0
    %2556 = vdwg.mxu0
    %v2557 = vmax.f32 %v2379, 0.0
    %v2558 = vmax.f32 %v2384, 0.0
    %v2559 = vmax.f32 %v2389, 0.0
    %v2560 = vmax.f32 %v2394, 0.0
    %v2561 = vmax.f32 %v2399, 0.0
    %v2562 = vmax.f32 %v2404, 0.0
    %v2563 = vmax.f32 %v2409, 0.0
    %v2564 = vmax.f32 %v2414, 0.0
    %v2565 = vmax.f32 %v2419, 0.0
    %v2566 = vmax.f32 %v2424, 0.0
    %v2567 = vmax.f32 %v2429, 0.0
    %v2568 = vmax.f32 %v2434, 0.0
    %v2569 = vmax.f32 %v2439, 0.0
    %v2570 = vmax.f32 %v2444, 0.0
    %v2571 = vmax.f32 %v2449, 0.0
    %v2572 = vmax.f32 %v2454, 0.0
    %v2573 = vmax.f32 %v2459, 0.0
    %v2574 = vmax.f32 %v2464, 0.0
    %v2575 = vmax.f32 %v2469, 0.0
    %v2576 = vmax.f32 %v2474, 0.0
    %v2577 = vmax.f32 %v2479, 0.0
    %v2578 = vmax.f32 %v2484, 0.0
    %v2579 = vmax.f32 %v2489, 0.0
    %v2580 = vmax.f32 %v2494, 0.0
    %v2581 = vmax.f32 %v2499, 0.0
    %v2582 = vmax.f32 %v2504, 0.0
    %v2583 = vmax.f32 %v2509, 0.0
    %v2584 = vmax.f32 %v2514, 0.0
    %v2585 = vmax.f32 %v2519, 0.0
    %v2586 = vmax.f32 %v2524, 0.0
    %v2587 = vmax.f32 %v2529, 0.0
    %v2588 = vmax.f32 %v2534, 0.0
    %v2589 = vmax.f32 %v2539, 0.0
    %v2590 = vmax.f32 %v2544, 0.0
    %v2591 = vmax.f32 %v2549, 0.0
    %v2592 = vmax.f32 %v2554, 0.0
    %vm2593 = vcmask 130048
    %2594 = vst.msk [vmem:[%s4] sm:$0xff] %vm2593, %v2557
    %2595 = vst.msk [vmem:[%s4 + $0x8] sm:$0xff] %vm2593, %v2558
    %2596 = vst.msk [vmem:[%s4 + $0x10] sm:$0xff] %vm2593, %v2559
    %2597 = vst.msk [vmem:[%s4 + $0x18] sm:$0xff] %vm2593, %v2560
    %2598 = vst.msk [vmem:[%s4 + $0x20] sm:$0xff] %vm2593, %v2561
    %2599 = vst.msk [vmem:[%s4 + $0x28] sm:$0xff] %vm2593, %v2562
    %2600 = vst.msk [vmem:[%s4 + $0x30] sm:$0xff] %vm2593, %v2563
    %2601 = vst.msk [vmem:[%s4 + $0x38] sm:$0xff] %vm2593, %v2564
    %2602 = vst.msk [vmem:[%s4 + $0x40] sm:$0xff] %vm2593, %v2565
    %2603 = vst.msk [vmem:[%s4 + $0x48] sm:$0xff] %vm2593, %v2566
    %2604 = vst.msk [vmem:[%s4 + $0x50] sm:$0xff] %vm2593, %v2567
    %2605 = vst.msk [vmem:[%s4 + $0x58] sm:$0xff] %vm2593, %v2568
    %2606 = vst.msk [vmem:[%s4 + $0x60] sm:$0xff] %vm2593, %v2569
    %2607 = vst.msk [vmem:[%s4 + $0x68] sm:$0xff] %vm2593, %v2570
    %2608 = vst.msk [vmem:[%s4 + $0x70] sm:$0xff] %vm2593, %v2571
    %2609 = vst.msk [vmem:[%s4 + $0x78] sm:$0xff] %vm2593, %v2572
    %2610 = vst.msk [vmem:[%s4 + $0x80] sm:$0xff] %vm2593, %v2573
    %2611 = vst.msk [vmem:[%s4 + $0x88] sm:$0xff] %vm2593, %v2574
    %2612 = vst.msk [vmem:[%s4 + $0x90] sm:$0xff] %vm2593, %v2575
    %2613 = vst.msk [vmem:[%s4 + $0x98] sm:$0xff] %vm2593, %v2576
    %2614 = vst.msk [vmem:[%s4 + $0xa0] sm:$0xff] %vm2593, %v2577
    %2615 = vst.msk [vmem:[%s4 + $0xa8] sm:$0xff] %vm2593, %v2578
    %2616 = vst.msk [vmem:[%s4 + $0xb0] sm:$0xff] %vm2593, %v2579
    %2617 = vst.msk [vmem:[%s4 + $0xb8] sm:$0xff] %vm2593, %v2580
    %2618 = vst.msk [vmem:[%s4 + $0xc0] sm:$0xff] %vm2593, %v2581
    %2619 = vst.msk [vmem:[%s4 + $0xc8] sm:$0xff] %vm2593, %v2582
    %2620 = vst.msk [vmem:[%s4 + $0xd0] sm:$0xff] %vm2593, %v2583
    %2621 = vst.msk [vmem:[%s4 + $0xd8] sm:$0xff] %vm2593, %v2584
    %2622 = vst.msk [vmem:[%s4 + $0xe0] sm:$0xff] %vm2593, %v2585
    %2623 = vst.msk [vmem:[%s4 + $0xe8] sm:$0xff] %vm2593, %v2586
    %2624 = vst.msk [vmem:[%s4 + $0xf0] sm:$0xff] %vm2593, %v2587
    %2625 = vst.msk [vmem:[%s4 + $0xf8] sm:$0xff] %vm2593, %v2588
    %2626 = vst.msk [vmem:[%s4 + $0x100] sm:$0xff] %vm2593, %v2589
    %2627 = vst.msk [vmem:[%s4 + $0x108] sm:$0xff] %vm2593, %v2590
    %2628 = vst.msk [vmem:[%s4 + $0x110] sm:$0xff] %vm2593, %v2591
    %2629 = vst.msk [vmem:[%s4 + $0x118] sm:$0xff] %vm2593, %v2592
    // Predicated region
    $region30: #{tpu_custom_call.1} parent=1 // pred_check
      _
    $region31: #{tpu_custom_call.1} parent=1 // pred_check_branch
      %2631 = sbr.rel (0) target = $region33
    $region32: #{tpu_custom_call.1} parent=1 // pred_region
      _
    $region33: #{tpu_custom_call.1} parent=1 // pred_fallthru
      _
    // Predicated region
    $region34: #{tpu_custom_call.1} parent=1 // pred_check
      _
    $region35: #{tpu_custom_call.1} parent=1 // pred_check_branch
      %2633 = sbr.rel (0) target = $region37
    $region36: #{tpu_custom_call.1} parent=1 // pred_region
      _
    $region37: #{tpu_custom_call.1} parent=1 // pred_fallthru
      _
    %2634 = vsyncpa [#allocation3], 1
    %2635 = vsyncpa [#allocation5], 1

</llo_original>
